<compile_context>
chip_gen: v7x
topology: tpu7x:2x2x1
jax: 0.10.0
libtpu: 0.0.40
codegen_flags: <defaults>
</compile_context>

<pallas_src>
import functools

import jax
import jax.numpy as jnp
import numpy as np
from jax.experimental import pallas as pl
from jax.experimental.pallas import tpu as pltpu

BN_EPS = 1e-5


# --------------------------------- kernel ---------------------------------
def _bottleneck_kernel(x_ref, w1_ref, b1_ref, w2_ref, b2_ref, w3_ref, b3_ref,
                       out_ref, *, H):
    x = x_ref[...]                                        # (R, W*Cin) bf16
    R = x.shape[0]

    # ---- stage 1: 1x1 conv (BN1 scale folded into weight) + bias + ReLU ----
    h1 = jnp.dot(x, w1_ref[...], preferred_element_type=jnp.float32)
    h1 = jnp.maximum(h1 + b1_ref[...], 0.0)               # (R, W*P) f32

    # ---- stage 2: fused dw3x3 + pw1x1 (+BN2) as 3 accumulated matmuls -------
    # dx shifts and x-boundary zeroing live in w2 (host-folded shifted-eye kron
    # blocks); only the y (row) shifts + image top/bottom masks remain here.
    y = jax.lax.broadcasted_iota(jnp.int32, (R, 1), 0) % H

    # dy == 1 (same row): no roll, no mask.
    h2 = jnp.dot(h1.astype(jnp.bfloat16), w2_ref[1],
                 preferred_element_type=jnp.float32)

    # dy == 0 (row above): up[r] = h1[r-1]; invalid at y == 0.
    up = pltpu.roll(h1, shift=1, axis=0)
    up = jnp.where(y >= 1, up, 0.0)
    h2 = h2 + jnp.dot(up.astype(jnp.bfloat16), w2_ref[0],
                      preferred_element_type=jnp.float32)

    # dy == 2 (row below): dn[r] = h1[r+1]; invalid at y == H-1.
    dn = pltpu.roll(h1, shift=R - 1, axis=0)
    dn = jnp.where(y < H - 1, dn, 0.0)
    h2 = h2 + jnp.dot(dn.astype(jnp.bfloat16), w2_ref[2],
                      preferred_element_type=jnp.float32)

    h2 = jnp.maximum(h2 + b2_ref[...], 0.0)               # (R, W*P) f32

    # ---- stage 3: 1x1 expansion conv (+BN3) + residual + final ReLU ---------
    h3 = jnp.dot(h2.astype(jnp.bfloat16), w3_ref[...],
                 preferred_element_type=jnp.float32)      # (R, W*Cout)
    out = jnp.maximum(h3 + b3_ref[...] + x.astype(jnp.float32), 0.0)
    out_ref[...] = out.astype(out_ref.dtype)


# ------------------------------ host-side prep ------------------------------
def fold_bn(gamma, beta, mean, var):
    s = gamma / jnp.sqrt(var + BN_EPS)
    return s, beta - mean * s


def fold_params(w1_t, w2d_t, w2p_t, w3_t, bn1, bn2, bn3, W):
    """Torch-shaped (OIHW) weights + BN params -> folded, block-diagonal, bf16."""
    P = w1_t.shape[0]
    Cout = w3_t.shape[0]

    s1, b1 = fold_bn(*bn1)
    s2, b2 = fold_bn(*bn2)
    s3, b3 = fold_bn(*bn3)

    w1 = jnp.transpose(w1_t[:, :, 0, 0]) * s1[None, :]                 # [Cin, P]
    w2d = jnp.transpose(w2d_t[:, 0, :, :], (1, 2, 0))                  # [dy, dx, c]
    w2p = jnp.transpose(w2p_t[:, :, 0, 0]) * s2[None, :]               # [c, o]
    w3 = jnp.transpose(w3_t[:, :, 0, 0]) * s3[None, :]                 # [P, Cout]

    eye_w = jnp.eye(W, dtype=jnp.float32)
    w1_bd = jnp.kron(eye_w, w1).astype(jnp.bfloat16)                   # [W*Cin, W*P]
    w3_bd = jnp.kron(eye_w, w3).astype(jnp.bfloat16)                   # [W*P, W*Cout]

    # Stage-2 weights: one (W*P, W*P) matrix per dy.  Each dx tap contributes
    # kron(eye(W, k=1-dx), w2d[dy,dx] * w2p); the shifted eye encodes both the
    # x shift and the zero padding at x boundaries (no in-kernel lane work).
    w2_per_dy = []
    for dy in range(3):
        acc = jnp.zeros((W * P, W * P), jnp.float32)
        for dx in range(3):
            w2f = w2d[dy, dx][:, None] * w2p                           # [c, o]
            shift_eye = jnp.eye(W, k=1 - dx, dtype=jnp.float32)
            acc = acc + jnp.kron(shift_eye, w2f)
        w2_per_dy.append(acc)
    w2_bd = jnp.stack(w2_per_dy, axis=0).astype(jnp.bfloat16)          # [3, W*P, W*P]

    return {
        "w1": w1_bd, "b1": jnp.tile(b1, W)[None, :],
        "w2": w2_bd, "b2": jnp.tile(b2, W)[None, :],
        "w3": w3_bd, "b3": jnp.tile(b3, W)[None, :],
        "planes": P, "cout": Cout,
    }


def _pick_block_n(N, H, target_rows=128):
    """Largest divisor of N with block_n*H <= target_rows and >= 2 grid steps."""
    best = 1
    for d in range(1, N + 1):
        if N % d:
            continue
        if d * H <= target_rows and (N // d >= 2 or N == 1):
            best = d
    return best


def bottleneck_pallas(x_nchw, params, *, block_n=None):
    N, Cin, H, W = x_nchw.shape
    P = int(params["planes"])
    Cout = int(params["cout"])
    assert Cout == Cin, "stride=1 / downsample=None requires inplanes == planes*expansion"

    if block_n is None:
        block_n = _pick_block_n(N, H)
    assert N % block_n == 0, "batch must be divisible by block_n"
    rows_blk = block_n * H
    assert rows_blk % 8 == 0 or rows_blk == N * H, "block rows must be sublane aligned"

    # Lane-dense layout: minor dim = W*Cin (128 in the demo).  bf16 at the HBM
    # boundary halves activation DMA bytes; math inside stays f32.
    x2d = jnp.transpose(x_nchw, (0, 2, 3, 1)).reshape(N * H, W * Cin)
    x2d = x2d.astype(jnp.bfloat16)

    kernel = functools.partial(_bottleneck_kernel, H=H)

    out2d = pl.pallas_call(
        kernel,
        out_shape=jax.ShapeDtypeStruct((N * H, W * Cout), jnp.bfloat16),
        grid=(N // block_n,),
        in_specs=[
            pl.BlockSpec((rows_blk, W * Cin), lambda b: (b, 0)),      # x (lane-dense)
            pl.BlockSpec((W * Cin, W * P), lambda b: (0, 0)),         # conv1 (+bn1)
            pl.BlockSpec((1, W * P), lambda b: (0, 0)),               # bn1 bias
            pl.BlockSpec((3, W * P, W * P), lambda b: (0, 0, 0)),     # fused dw+pw (+bn2), per-dy
            pl.BlockSpec((1, W * P), lambda b: (0, 0)),               # bn2 bias
            pl.BlockSpec((W * P, W * Cout), lambda b: (0, 0)),        # conv3 (+bn3)
            pl.BlockSpec((1, W * Cout), lambda b: (0, 0)),            # bn3 bias
        ],
        out_specs=pl.BlockSpec((rows_blk, W * Cout), lambda b: (b, 0)),
        compiler_params=pltpu.CompilerParams(
            dimension_semantics=("parallel",)),
    )(x2d, params["w1"], params["b1"], params["w2"], params["b2"],
      params["w3"], params["b3"])

    return jnp.transpose(out2d.reshape(N, H, W, Cout), (0, 3, 1, 2))


# -------------------------- pure-JAX reference (NCHW) --------------------------
def bottleneck_reference(x_nchw, params):
    def conv(x, w, groups=1, pad=0):
        return jax.lax.conv_general_dilated(
            x, w, window_strides=(1, 1),
            padding=((pad, pad), (pad, pad)),
            dimension_numbers=("NCHW", "OIHW", "NCHW"),
            feature_group_count=groups)

    def bn(x, gamma, beta, mean, var):
        s = gamma / jnp.sqrt(var + BN_EPS)
        return x * s[None, :, None, None] + (beta - mean * s)[None, :, None, None]

    p = params
    out = jax.nn.relu(bn(conv(x_nchw, p["w1"]), *p["bn1"]))
    out = conv(out, p["w2d"], groups=p["w2d"].shape[0], pad=1)
    out = conv(out, p["w2p"])
    out = jax.nn.relu(bn(out, *p["bn2"]))
    out = bn(conv(out, p["w3"]), *p["bn3"])
    return jax.nn.relu(out + x_nchw)


if __name__ == "__main__":
    # Small shapes consistent with the module (inplanes = planes * expansion).
    # N chosen so a grid step carries 128 rows (block_n * H) while still giving
    # >= 2 parallel grid steps (v7x has two TensorCores).
    N, inplanes, H, W = 32, 16, 8, 8
    planes, expansion = 4, 4
    Cout = planes * expansion  # == inplanes

    key = jax.random.PRNGKey(0)
    ks = jax.random.split(key, 8)

    # Torch-shaped (OIHW) conv weights, deterministic init.
    w1_t = jax.random.normal(ks[0], (planes, inplanes, 1, 1), jnp.float32) * 0.1
    w2d_t = jax.random.normal(ks[1], (planes, 1, 3, 3), jnp.float32) * 0.1
    w2p_t = jax.random.normal(ks[2], (planes, planes, 1, 1), jnp.float32) * 0.1
    w3_t = jax.random.normal(ks[3], (Cout, planes, 1, 1), jnp.float32) * 0.1

    def bn_params(k, c):
        k1, k2, k3, k4 = jax.random.split(k, 4)
        return (jax.random.uniform(k1, (c,), jnp.float32, 0.5, 1.5),
                jax.random.normal(k2, (c,), jnp.float32) * 0.1,
                jax.random.normal(k3, (c,), jnp.float32) * 0.1,
                jax.random.uniform(k4, (c,), jnp.float32, 0.5, 1.5))

    bn1 = bn_params(ks[4], planes)
    bn2 = bn_params(ks[5], planes)
    bn3 = bn_params(ks[6], Cout)

    x_nchw = jax.random.normal(ks[7], (N, inplanes, H, W), jnp.float32)

    params = fold_params(w1_t, w2d_t, w2p_t, w3_t, bn1, bn2, bn3, W=W)
    out_nchw = bottleneck_pallas(x_nchw, params)          # block_n auto -> 16 (128 rows/step, grid=2)
    out_nchw = jax.block_until_ready(out_nchw)

    ref = bottleneck_reference(
        x_nchw,
        {"w1": w1_t, "w2d": w2d_t, "w2p": w2p_t, "w3": w3_t,
         "bn1": bn1, "bn2": bn2, "bn3": bn3})
    ref = jax.block_until_ready(ref)

    # bf16 I/O + bf16 MXU operands (f32 accumulation) -> loose-ish tolerance.
    np.testing.assert_allclose(np.asarray(out_nchw.astype(jnp.float32)),
                               np.asarray(ref), rtol=2e-2, atol=2e-2)
    print("KERNEL_OK")
</pallas_src>

<mosaic_0001>
module attributes {stable_mosaic.version = 11 : i64} {
  func.func @_bottleneck_kernel(%arg0: i32, %arg1: memref<128x128xbf16, #tpu.memory_space<vmem>>, %arg2: memref<128x32xbf16, #tpu.memory_space<vmem>>, %arg3: memref<1x32xf32, #tpu.memory_space<vmem>>, %arg4: memref<3x32x32xbf16, #tpu.memory_space<vmem>>, %arg5: memref<1x32xf32, #tpu.memory_space<vmem>>, %arg6: memref<32x128xbf16, #tpu.memory_space<vmem>>, %arg7: memref<1x128xf32, #tpu.memory_space<vmem>>, %arg8: memref<128x128xbf16, #tpu.memory_space<vmem>>) attributes {dimension_semantics = [#tpu.dimension_semantics<parallel>], iteration_bounds = array<i64: 2>, scalar_prefetch = 0 : i64, scratch_operands = 0 : i64, tpu.core_type = #tpu.core_type<tc>, window_params = [{transform_indices = @transform_0, window_bounds = array<i64: 128, 128>}, {pipeline_mode = #tpu.pipeline_mode<synchronous>, transform_indices = @transform_1, window_bounds = array<i64: 128, 32>}, {pipeline_mode = #tpu.pipeline_mode<synchronous>, transform_indices = @transform_2, window_bounds = array<i64: 1, 32>}, {pipeline_mode = #tpu.pipeline_mode<synchronous>, transform_indices = @transform_3, window_bounds = array<i64: 3, 32, 32>}, {pipeline_mode = #tpu.pipeline_mode<synchronous>, transform_indices = @transform_4, window_bounds = array<i64: 1, 32>}, {pipeline_mode = #tpu.pipeline_mode<synchronous>, transform_indices = @transform_5, window_bounds = array<i64: 32, 128>}, {pipeline_mode = #tpu.pipeline_mode<synchronous>, transform_indices = @transform_6, window_bounds = array<i64: 1, 128>}, {transform_indices = @transform_7, window_bounds = array<i64: 128, 128>}]} {
    %c0 = arith.constant 0 : index
    %c0_0 = arith.constant 0 : index
    %0 = vector.load %arg1[%c0, %c0_0] : memref<128x128xbf16, #tpu.memory_space<vmem>>, vector<128x128xbf16>
    %c0_1 = arith.constant 0 : index
    %c0_2 = arith.constant 0 : index
    %1 = vector.load %arg2[%c0_1, %c0_2] : memref<128x32xbf16, #tpu.memory_space<vmem>>, vector<128x32xbf16>
    %cst = arith.constant dense<0.000000e+00> : vector<128x32xf32>
    %2 = tpu.matmul %0, %1, %cst {dimension_numbers = #tpu.dot_dimension_numbers<[1], [0], [0], [1], [0, 0, 1, 1], [], []>} : vector<128x128xbf16>, vector<128x32xbf16>, vector<128x32xf32> -> vector<128x32xf32>
    %c0_3 = arith.constant 0 : index
    %c0_4 = arith.constant 0 : index
    %3 = vector.load %arg3[%c0_3, %c0_4] : memref<1x32xf32, #tpu.memory_space<vmem>>, vector<1x32xf32>
    %4 = vector.broadcast %3 : vector<1x32xf32> to vector<128x32xf32>
    %5 = arith.addf %2, %4 : vector<128x32xf32>
    %cst_5 = arith.constant 0.000000e+00 : f32
    %6 = vector.broadcast %cst_5 : f32 to vector<128x32xf32>
    %7 = arith.maximumf %5, %6 : vector<128x32xf32>
    %8 = tpu.iota {dimensions = array<i32: 0>} : vector<128x1xi32>
    %c8_i32 = arith.constant 8 : i32
    %c0_i32 = arith.constant 0 : i32
    %9 = arith.cmpi eq, %c8_i32, %c0_i32 : i32
    %c1_i32 = arith.constant 1 : i32
    %10 = arith.select %9, %c1_i32, %c8_i32 : i32
    %11 = vector.broadcast %10 : i32 to vector<128x1xi32>
    %12 = arith.remsi %8, %11 : vector<128x1xi32>
    %c0_i32_6 = arith.constant 0 : i32
    %13 = vector.broadcast %c0_i32_6 : i32 to vector<128x1xi32>
    %14 = arith.cmpi ne, %12, %13 : vector<128x1xi32>
    %c0_i32_7 = arith.constant 0 : i32
    %15 = vector.broadcast %c0_i32_7 : i32 to vector<128x1xi32>
    %16 = arith.cmpi slt, %12, %15 : vector<128x1xi32>
    %c0_i32_8 = arith.constant 0 : i32
    %17 = arith.cmpi slt, %10, %c0_i32_8 : i32
    %18 = vector.broadcast %17 : i1 to vector<128x1xi1>
    %19 = vector.broadcast %18 : vector<128x1xi1> to vector<128x1xi1>
    %20 = arith.xori %16, %19 : vector<128x1xi1>
    %21 = arith.andi %20, %14 : vector<128x1xi1>
    %22 = vector.broadcast %10 : i32 to vector<128x1xi32>
    %23 = arith.addi %12, %22 : vector<128x1xi32>
    %24 = arith.select %21, %23, %12 : vector<128x1xi1>, vector<128x1xi32>
    %25 = arith.truncf %7 : vector<128x32xf32> to vector<128x32xbf16>
    %c1 = arith.constant 1 : index
    %c0_9 = arith.constant 0 : index
    %c0_10 = arith.constant 0 : index
    %26 = vector.load %arg4[%c1, %c0_9, %c0_10] : memref<3x32x32xbf16, #tpu.memory_space<vmem>>, vector<1x32x32xbf16>
    %27 = vector.shape_cast %26 : vector<1x32x32xbf16> to vector<32x32xbf16>
    %cst_11 = arith.constant dense<0.000000e+00> : vector<128x32xf32>
    %28 = tpu.matmul %25, %27, %cst_11 {dimension_numbers = #tpu.dot_dimension_numbers<[1], [0], [0], [1], [0, 0, 1, 1], [], []>} : vector<128x32xbf16>, vector<32x32xbf16>, vector<128x32xf32> -> vector<128x32xf32>
    %c1_i32_12 = arith.constant 1 : i32
    %29 = tpu.dynamic_rotate %7 by %c1_i32_12 dim 0 : vector<128x32xf32>, i32 -> vector<128x32xf32>
    %c1_i32_13 = arith.constant 1 : i32
    %30 = vector.broadcast %c1_i32_13 : i32 to vector<128x1xi32>
    %31 = arith.cmpi sge, %24, %30 : vector<128x1xi32>
    %cst_14 = arith.constant 0.000000e+00 : f32
    %32 = vector.shape_cast %31 : vector<128x1xi1> to vector<128x1xi1>
    %33 = vector.broadcast %32 : vector<128x1xi1> to vector<128x32xi1>
    %34 = vector.broadcast %cst_14 : f32 to vector<128x32xf32>
    %35 = arith.select %33, %29, %34 : vector<128x32xi1>, vector<128x32xf32>
    %36 = arith.truncf %35 : vector<128x32xf32> to vector<128x32xbf16>
    %c0_15 = arith.constant 0 : index
    %c0_16 = arith.constant 0 : index
    %c0_17 = arith.constant 0 : index
    %37 = vector.load %arg4[%c0_15, %c0_16, %c0_17] : memref<3x32x32xbf16, #tpu.memory_space<vmem>>, vector<1x32x32xbf16>
    %38 = vector.shape_cast %37 : vector<1x32x32xbf16> to vector<32x32xbf16>
    %cst_18 = arith.constant dense<0.000000e+00> : vector<128x32xf32>
    %39 = tpu.matmul %36, %38, %cst_18 {dimension_numbers = #tpu.dot_dimension_numbers<[1], [0], [0], [1], [0, 0, 1, 1], [], []>} : vector<128x32xbf16>, vector<32x32xbf16>, vector<128x32xf32> -> vector<128x32xf32>
    %40 = arith.addf %28, %39 : vector<128x32xf32>
    %c127_i32 = arith.constant 127 : i32
    %41 = tpu.dynamic_rotate %7 by %c127_i32 dim 0 : vector<128x32xf32>, i32 -> vector<128x32xf32>
    %c7_i32 = arith.constant 7 : i32
    %42 = vector.broadcast %c7_i32 : i32 to vector<128x1xi32>
    %43 = arith.cmpi slt, %24, %42 : vector<128x1xi32>
    %cst_19 = arith.constant 0.000000e+00 : f32
    %44 = vector.shape_cast %43 : vector<128x1xi1> to vector<128x1xi1>
    %45 = vector.broadcast %44 : vector<128x1xi1> to vector<128x32xi1>
    %46 = vector.broadcast %cst_19 : f32 to vector<128x32xf32>
    %47 = arith.select %45, %41, %46 : vector<128x32xi1>, vector<128x32xf32>
    %48 = arith.truncf %47 : vector<128x32xf32> to vector<128x32xbf16>
    %c2 = arith.constant 2 : index
    %c0_20 = arith.constant 0 : index
    %c0_21 = arith.constant 0 : index
    %49 = vector.load %arg4[%c2, %c0_20, %c0_21] : memref<3x32x32xbf16, #tpu.memory_space<vmem>>, vector<1x32x32xbf16>
    %50 = vector.shape_cast %49 : vector<1x32x32xbf16> to vector<32x32xbf16>
    %cst_22 = arith.constant dense<0.000000e+00> : vector<128x32xf32>
    %51 = tpu.matmul %48, %50, %cst_22 {dimension_numbers = #tpu.dot_dimension_numbers<[1], [0], [0], [1], [0, 0, 1, 1], [], []>} : vector<128x32xbf16>, vector<32x32xbf16>, vector<128x32xf32> -> vector<128x32xf32>
    %52 = arith.addf %40, %51 : vector<128x32xf32>
    %c0_23 = arith.constant 0 : index
    %c0_24 = arith.constant 0 : index
    %53 = vector.load %arg5[%c0_23, %c0_24] : memref<1x32xf32, #tpu.memory_space<vmem>>, vector<1x32xf32>
    %54 = vector.broadcast %53 : vector<1x32xf32> to vector<128x32xf32>
    %55 = arith.addf %52, %54 : vector<128x32xf32>
    %cst_25 = arith.constant 0.000000e+00 : f32
    %56 = vector.broadcast %cst_25 : f32 to vector<128x32xf32>
    %57 = arith.maximumf %55, %56 : vector<128x32xf32>
    %58 = arith.truncf %57 : vector<128x32xf32> to vector<128x32xbf16>
    %c0_26 = arith.constant 0 : index
    %c0_27 = arith.constant 0 : index
    %59 = vector.load %arg6[%c0_26, %c0_27] : memref<32x128xbf16, #tpu.memory_space<vmem>>, vector<32x128xbf16>
    %cst_28 = arith.constant dense<0.000000e+00> : vector<128x128xf32>
    %60 = tpu.matmul %58, %59, %cst_28 {dimension_numbers = #tpu.dot_dimension_numbers<[1], [0], [0], [1], [0, 0, 1, 1], [], []>} : vector<128x32xbf16>, vector<32x128xbf16>, vector<128x128xf32> -> vector<128x128xf32>
    %c0_29 = arith.constant 0 : index
    %c0_30 = arith.constant 0 : index
    %61 = vector.load %arg7[%c0_29, %c0_30] : memref<1x128xf32, #tpu.memory_space<vmem>>, vector<1x128xf32>
    %62 = vector.broadcast %61 : vector<1x128xf32> to vector<128x128xf32>
    %63 = arith.addf %60, %62 : vector<128x128xf32>
    %64 = arith.extf %0 : vector<128x128xbf16> to vector<128x128xf32>
    %65 = arith.addf %63, %64 : vector<128x128xf32>
    %cst_31 = arith.constant 0.000000e+00 : f32
    %66 = vector.broadcast %cst_31 : f32 to vector<128x128xf32>
    %67 = arith.maximumf %65, %66 : vector<128x128xf32>
    %68 = arith.truncf %67 : vector<128x128xf32> to vector<128x128xbf16>
    %c0_32 = arith.constant 0 : index
    %c0_33 = arith.constant 0 : index
    %69 = vector.load %arg8[%c0_32, %c0_33] : memref<128x128xbf16, #tpu.memory_space<vmem>>, vector<128x128xbf16>
    tpu.vector_store %arg8[%c0_32, %c0_33], %68 {strides = array<i32>} : memref<128x128xbf16, #tpu.memory_space<vmem>>, vector<128x128xbf16>,
    return
  }
  func.func @transform_0(%arg0: i32) -> (i32, i32) {
    %c0_i32 = arith.constant 0 : i32
    %c0_i32_0 = arith.constant 0 : i32
    return %arg0, %c0_i32 : i32, i32
  }
  func.func @transform_1(%arg0: i32) -> (i32, i32) {
    %c0_i32 = arith.constant 0 : i32
    %c0_i32_0 = arith.constant 0 : i32
    %c0_i32_1 = arith.constant 0 : i32
    return %c0_i32, %c0_i32_0 : i32, i32
  }
  func.func @transform_2(%arg0: i32) -> (i32, i32) {
    %c0_i32 = arith.constant 0 : i32
    %c0_i32_0 = arith.constant 0 : i32
    %c0_i32_1 = arith.constant 0 : i32
    return %c0_i32, %c0_i32_0 : i32, i32
  }
  func.func @transform_3(%arg0: i32) -> (i32, i32, i32) {
    %c0_i32 = arith.constant 0 : i32
    %c0_i32_0 = arith.constant 0 : i32
    %c0_i32_1 = arith.constant 0 : i32
    %c0_i32_2 = arith.constant 0 : i32
    return %c0_i32, %c0_i32_0, %c0_i32_1 : i32, i32, i32
  }
  func.func @transform_4(%arg0: i32) -> (i32, i32) {
    %c0_i32 = arith.constant 0 : i32
    %c0_i32_0 = arith.constant 0 : i32
    %c0_i32_1 = arith.constant 0 : i32
    return %c0_i32, %c0_i32_0 : i32, i32
  }
  func.func @transform_5(%arg0: i32) -> (i32, i32) {
    %c0_i32 = arith.constant 0 : i32
    %c0_i32_0 = arith.constant 0 : i32
    %c0_i32_1 = arith.constant 0 : i32
    return %c0_i32, %c0_i32_0 : i32, i32
  }
  func.func @transform_6(%arg0: i32) -> (i32, i32) {
    %c0_i32 = arith.constant 0 : i32
    %c0_i32_0 = arith.constant 0 : i32
    %c0_i32_1 = arith.constant 0 : i32
    return %c0_i32, %c0_i32_0 : i32, i32
  }
  func.func @transform_7(%arg0: i32) -> (i32, i32) {
    %c0_i32 = arith.constant 0 : i32
    %c0_i32_0 = arith.constant 0 : i32
    return %arg0, %c0_i32 : i32, i32
  }
}

</mosaic_0001>

<llo_original>
// kernel: tpu_custom_call.1
$region0: #{tpu_custom_call.1}
  #allocation0 [shape = 'u32[]', space=smem, size = 0x4, offset = 0x4, fixed_abs, tag = 'smem constant byte address 0x4 - core index']
  #allocation1 [shape = 'u32[144,128]{1,0:T(1,128)}', space=vmem, size = 0x12000, scoped, tag = 'internal scratch']
  %s0 = inlined_call_operand.hbm [shape: bf16[256,128], index: 0, kind: input, shape index: {}]
  %s1 = inlined_call_operand.vmem [shape: bf16[128,32], index: 1, kind: input, shape index: {}]
  %s2 = inlined_call_operand.vmem [shape: f32[1,32], index: 2, kind: input, shape index: {}]
  %s3 = inlined_call_operand.vmem [shape: bf16[3,32,32], index: 3, kind: input, shape index: {}]
  %s4 = inlined_call_operand.vmem [shape: f32[1,32], index: 4, kind: input, shape index: {}]
  %s5 = inlined_call_operand.vmem [shape: bf16[32,128], index: 5, kind: input, shape index: {}]
  %s6 = inlined_call_operand.vmem [shape: f32[1,128], index: 6, kind: input, shape index: {}]
  %s7 = inlined_call_operand.hbm [shape: bf16[256,128], index: 7, kind: output, shape index: {}]
  %s8 = sld [smem:[#allocation0]]
  $region65: #{tpu_custom_call.1} parent=0
    _
  %s10 = ssub.s32 1, %s8
  %s11 = scalar_select 0, %s10, %s8
  $region1: #{tpu_custom_call.1} parent=0
    #allocation2 [shape = 'u8[65536]{0}', space=vmem, size = 0x10000, scoped, tag = 'input window, operand 0']
    #allocation3 [shape = 's32[2]{0}', space=sflag, size = 0x8, scoped, tag = 'scoped memory for tpu_custom_call.1']
    #allocation4 [shape = 's32[2]{0}', space=sflag, size = 0x8, scoped, tag = 'scoped memory for tpu_custom_call.1']
    #allocation5 [shape = 'u8[65536]{0}', space=vmem, size = 0x10000, scoped, tag = 'output window, operand 0']
    %12 = vsyncpa [#allocation3], 0
    %s13 = scalar_lea.sflag [#allocation3], 1
    %14 = vsyncpa %s13, 0
    %15 = vsyncpa [#allocation4], 0
    %s16 = scalar_lea.sflag [#allocation4], 1
    %17 = vsyncpa %s16, 0
    loop: start=0, step=1, limit=4
    $region2: #{tpu_custom_call.1} parent=1 // loop_pre_header
      _
    $region3: #{tpu_custom_call.1} parent=1 // loop_header
      %s19 = sphi 0, %s23
      %p20 = scmp.ge.s32.totalorder %s19, 4
      %s29 = sphi 0, %s31
      %s32 = sphi 0, %s29
      %s33 = sphi 0, %s32
      %s49 = sphi 0, %s33
      %s53 = sphi 0, %s53
      %s55 = sphi 0, %s53
      %s56 = sphi 0, %s55
      %s70 = sphi 0, %s56
      %s74 = sphi 0, %s74
      %s76 = sphi 0, %s74
      %s77 = sphi 0, %s76
      %s91 = sphi 0, %s77
      %s95 = sphi 0, %s95
      %s97 = sphi 0, %s95
      %s98 = sphi 0, %s97
      %s112 = sphi 0, %s98
      %s116 = sphi 0, %s116
      %s118 = sphi 0, %s116
      %s119 = sphi 0, %s118
      %s133 = sphi 0, %s119
      %s137 = sphi 0, %s137
      %s139 = sphi 0, %s137
      %s140 = sphi 0, %s139
      %s154 = sphi 0, %s140
      %s158 = sphi 0, %s158
      %s160 = sphi 0, %s158
      %s161 = sphi 0, %s160
      %s175 = sphi 0, %s161
      %s181 = sphi 0, %s183
      %s184 = sphi 0, %s181
      %s185 = sphi 0, %s184
      %s201 = sphi 0, %s185
    $region4: #{tpu_custom_call.1} parent=1 // loop_header_branch
      %22 = sbr.rel (%p20) target = $region8
    $region5: #{tpu_custom_call.1} parent=1 // loop_body
      %s24 = ssub.s32 %s19, 1
      %s25 = ssub.s32 %s19, 2
      %s26 = sadd.s32 %s19, 1
      %s27 = ssub.s32 %s19, %s26
      %p28 = scmp.eq.s32.totalorder %s27, 0
      %s30 = sadd.s32 %s29, 1
      %s31 = scalar_select %p28, %s29, %s30
      %p34 = pneg %p28
      %p35 = scmp.eq.s32.totalorder %s19, 1
      %p36 = por %p34, %p35
      %p37 = scmp.ne.s32.totalorder %s29, %s32
      %p38 = scmp.eq.s32.totalorder %s19, 0
      %p39 = por %p37, %p38
      %p40 = scmp.ne.s32.totalorder %s29, %s32
      %p41 = scmp.eq.s32.totalorder %s24, 1
      %p42 = por %p40, %p41
      %p43 = scmp.ne.s32.totalorder %s32, %s33
      %p44 = scmp.eq.s32.totalorder %s24, 0
      %p45 = por %p43, %p44
      %p46 = scmp.ne.s32.totalorder %s32, %s33
      %p47 = scmp.eq.s32.totalorder %s25, 1
      %p48 = por %p46, %p47
      %p50 = scmp.ne.s32.totalorder %s33, %s49
      %p51 = scmp.eq.s32.totalorder %s25, 0
      %p52 = por %p50, %p51
      %s54 = sadd.s32 %s53, 1
      %p57 = scmp.eq.s32.totalorder %s19, 1
      %p58 = scmp.ne.s32.totalorder %s53, %s55
      %p59 = scmp.eq.s32.totalorder %s19, 0
      %p60 = por %p58, %p59
      %p61 = scmp.ne.s32.totalorder %s53, %s55
      %p62 = scmp.eq.s32.totalorder %s24, 1
      %p63 = por %p61, %p62
      %p64 = scmp.ne.s32.totalorder %s55, %s56
      %p65 = scmp.eq.s32.totalorder %s24, 0
      %p66 = por %p64, %p65
      %p67 = scmp.ne.s32.totalorder %s55, %s56
      %p68 = scmp.eq.s32.totalorder %s25, 1
      %p69 = por %p67, %p68
      %p71 = scmp.ne.s32.totalorder %s56, %s70
      %p72 = scmp.eq.s32.totalorder %s25, 0
      %p73 = por %p71, %p72
      %s75 = sadd.s32 %s74, 1
      %p78 = scmp.eq.s32.totalorder %s19, 1
      %p79 = scmp.ne.s32.totalorder %s74, %s76
      %p80 = scmp.eq.s32.totalorder %s19, 0
      %p81 = por %p79, %p80
      %p82 = scmp.ne.s32.totalorder %s74, %s76
      %p83 = scmp.eq.s32.totalorder %s24, 1
      %p84 = por %p82, %p83
      %p85 = scmp.ne.s32.totalorder %s76, %s77
      %p86 = scmp.eq.s32.totalorder %s24, 0
      %p87 = por %p85, %p86
      %p88 = scmp.ne.s32.totalorder %s76, %s77
      %p89 = scmp.eq.s32.totalorder %s25, 1
      %p90 = por %p88, %p89
      %p92 = scmp.ne.s32.totalorder %s77, %s91
      %p93 = scmp.eq.s32.totalorder %s25, 0
      %p94 = por %p92, %p93
      %s96 = sadd.s32 %s95, 1
      %p99 = scmp.eq.s32.totalorder %s19, 1
      %p100 = scmp.ne.s32.totalorder %s95, %s97
      %p101 = scmp.eq.s32.totalorder %s19, 0
      %p102 = por %p100, %p101
      %p103 = scmp.ne.s32.totalorder %s95, %s97
      %p104 = scmp.eq.s32.totalorder %s24, 1
      %p105 = por %p103, %p104
      %p106 = scmp.ne.s32.totalorder %s97, %s98
      %p107 = scmp.eq.s32.totalorder %s24, 0
      %p108 = por %p106, %p107
      %p109 = scmp.ne.s32.totalorder %s97, %s98
      %p110 = scmp.eq.s32.totalorder %s25, 1
      %p111 = por %p109, %p110
      %p113 = scmp.ne.s32.totalorder %s98, %s112
      %p114 = scmp.eq.s32.totalorder %s25, 0
      %p115 = por %p113, %p114
      %s117 = sadd.s32 %s116, 1
      %p120 = scmp.eq.s32.totalorder %s19, 1
      %p121 = scmp.ne.s32.totalorder %s116, %s118
      %p122 = scmp.eq.s32.totalorder %s19, 0
      %p123 = por %p121, %p122
      %p124 = scmp.ne.s32.totalorder %s116, %s118
      %p125 = scmp.eq.s32.totalorder %s24, 1
      %p126 = por %p124, %p125
      %p127 = scmp.ne.s32.totalorder %s118, %s119
      %p128 = scmp.eq.s32.totalorder %s24, 0
      %p129 = por %p127, %p128
      %p130 = scmp.ne.s32.totalorder %s118, %s119
      %p131 = scmp.eq.s32.totalorder %s25, 1
      %p132 = por %p130, %p131
      %p134 = scmp.ne.s32.totalorder %s119, %s133
      %p135 = scmp.eq.s32.totalorder %s25, 0
      %p136 = por %p134, %p135
      %s138 = sadd.s32 %s137, 1
      %p141 = scmp.eq.s32.totalorder %s19, 1
      %p142 = scmp.ne.s32.totalorder %s137, %s139
      %p143 = scmp.eq.s32.totalorder %s19, 0
      %p144 = por %p142, %p143
      %p145 = scmp.ne.s32.totalorder %s137, %s139
      %p146 = scmp.eq.s32.totalorder %s24, 1
      %p147 = por %p145, %p146
      %p148 = scmp.ne.s32.totalorder %s139, %s140
      %p149 = scmp.eq.s32.totalorder %s24, 0
      %p150 = por %p148, %p149
      %p151 = scmp.ne.s32.totalorder %s139, %s140
      %p152 = scmp.eq.s32.totalorder %s25, 1
      %p153 = por %p151, %p152
      %p155 = scmp.ne.s32.totalorder %s140, %s154
      %p156 = scmp.eq.s32.totalorder %s25, 0
      %p157 = por %p155, %p156
      %s159 = sadd.s32 %s158, 1
      %p162 = scmp.eq.s32.totalorder %s19, 1
      %p163 = scmp.ne.s32.totalorder %s158, %s160
      %p164 = scmp.eq.s32.totalorder %s19, 0
      %p165 = por %p163, %p164
      %p166 = scmp.ne.s32.totalorder %s158, %s160
      %p167 = scmp.eq.s32.totalorder %s24, 1
      %p168 = por %p166, %p167
      %p169 = scmp.ne.s32.totalorder %s160, %s161
      %p170 = scmp.eq.s32.totalorder %s24, 0
      %p171 = por %p169, %p170
      %p172 = scmp.ne.s32.totalorder %s160, %s161
      %p173 = scmp.eq.s32.totalorder %s25, 1
      %p174 = por %p172, %p173
      %p176 = scmp.ne.s32.totalorder %s161, %s175
      %p177 = scmp.eq.s32.totalorder %s25, 0
      %p178 = por %p176, %p177
      %s179 = ssub.s32 %s19, %s26
      %p180 = scmp.eq.s32.totalorder %s179, 0
      %s182 = sadd.s32 %s181, 1
      %s183 = scalar_select %p180, %s181, %s182
      %p186 = pneg %p180
      %p187 = scmp.eq.s32.totalorder %s19, 1
      %p188 = por %p186, %p187
      %p189 = scmp.ne.s32.totalorder %s181, %s184
      %p190 = scmp.eq.s32.totalorder %s19, 0
      %p191 = por %p189, %p190
      %p192 = scmp.ne.s32.totalorder %s181, %s184
      %p193 = scmp.eq.s32.totalorder %s24, 1
      %p194 = por %p192, %p193
      %p195 = scmp.ne.s32.totalorder %s184, %s185
      %p196 = scmp.eq.s32.totalorder %s24, 0
      %p197 = por %p195, %p196
      %p198 = scmp.ne.s32.totalorder %s184, %s185
      %p199 = scmp.eq.s32.totalorder %s25, 1
      %p200 = por %p198, %p199
      %p202 = scmp.ne.s32.totalorder %s185, %s201
      %p203 = scmp.eq.s32.totalorder %s25, 0
      %p204 = por %p202, %p203
      %p205 = scmp.le.s32.totalorder 1, %s19
      %p206 = scmp.lt.s32.totalorder %s19, 3
      %p207 = pnand %p205, %p206
      %p208 = pneg %p207
      // Predicated region
      $region9: #{tpu_custom_call.1} parent=5 // pred_check
        _
      $region10: #{tpu_custom_call.1} parent=5 // pred_check_branch
        %210 = sbr.rel (%p207) target = $region12
      $region11: #{tpu_custom_call.1} parent=5 // pred_region
        %s211 = ssub.s32 %s19, 1
        // Predicated region
        $region13: #{tpu_custom_call.1} parent=11 // pred_check
          %p212 = pneg %p66
        $region14: #{tpu_custom_call.1} parent=11 // pred_check_branch
          %214 = sbr.rel (%p212) target = $region16
        $region15: #{tpu_custom_call.1} parent=11 // pred_region
          _
        $region16: #{tpu_custom_call.1} parent=11 // pred_fallthru
          _
        // Predicated region
        $region17: #{tpu_custom_call.1} parent=11 // pred_check
          %p215 = pneg %p87
        $region18: #{tpu_custom_call.1} parent=11 // pred_check_branch
          %217 = sbr.rel (%p215) target = $region20
        $region19: #{tpu_custom_call.1} parent=11 // pred_region
          _
        $region20: #{tpu_custom_call.1} parent=11 // pred_fallthru
          _
        // Predicated region
        $region21: #{tpu_custom_call.1} parent=11 // pred_check
          %p218 = pneg %p108
        $region22: #{tpu_custom_call.1} parent=11 // pred_check_branch
          %220 = sbr.rel (%p218) target = $region24
        $region23: #{tpu_custom_call.1} parent=11 // pred_region
          _
        $region24: #{tpu_custom_call.1} parent=11 // pred_fallthru
          _
        // Predicated region
        $region25: #{tpu_custom_call.1} parent=11 // pred_check
          %p221 = pneg %p129
        $region26: #{tpu_custom_call.1} parent=11 // pred_check_branch
          %223 = sbr.rel (%p221) target = $region28
        $region27: #{tpu_custom_call.1} parent=11 // pred_region
          _
        $region28: #{tpu_custom_call.1} parent=11 // pred_fallthru
          _
        // Predicated region
        $region29: #{tpu_custom_call.1} parent=11 // pred_check
          %p224 = pneg %p150
        $region30: #{tpu_custom_call.1} parent=11 // pred_check_branch
          %226 = sbr.rel (%p224) target = $region32
        $region31: #{tpu_custom_call.1} parent=11 // pred_region
          _
        $region32: #{tpu_custom_call.1} parent=11 // pred_fallthru
          _
        // Predicated region
        $region33: #{tpu_custom_call.1} parent=11 // pred_check
          %p227 = pneg %p171
        $region34: #{tpu_custom_call.1} parent=11 // pred_check_branch
          %229 = sbr.rel (%p227) target = $region36
        $region35: #{tpu_custom_call.1} parent=11 // pred_region
          _
        $region36: #{tpu_custom_call.1} parent=11 // pred_fallthru
          _
      $region12: #{tpu_custom_call.1} parent=5 // pred_fallthru
        _
      %p230 = scmp.lt.s32.totalorder %s19, 2
      // Predicated region
      $region37: #{tpu_custom_call.1} parent=5 // pred_check
        %p231 = pneg %p230
      $region38: #{tpu_custom_call.1} parent=5 // pred_check_branch
        %233 = sbr.rel (%p231) target = $region40
      $region39: #{tpu_custom_call.1} parent=5 // pred_region
        // Predicated region
        $region41: #{tpu_custom_call.1} parent=39 // pred_check
          %p234 = pneg %p39
        $region42: #{tpu_custom_call.1} parent=39 // pred_check_branch
          %236 = sbr.rel (%p234) target = $region44
        $region43: #{tpu_custom_call.1} parent=39 // pred_region
          %s237 = sand.u32 %s29, 1
          %s238 = scalar_lea.sflag [#allocation3], %s237
          %s239 = sand.u32 %s29, 1
          %s240 = smul.addr %s239, 64
          %s241 = scalar_lea.vmem [#allocation2], %s240
          %s242 = smul.u32 16, %s19
          %s244 = ssub.s32 1024, 1024
          %245 = vsyncadd %s238, %s244
          %s246 = smul.addr %s242, 64
          %s247 = scalar_lea.hbm %s0, %s246
          %s248 = sshll.u32 %s241, 4
          %s249 = int_to_ptr.vmem [resolvable:$true] %s248
          %254 = dma.hbm_to_vmem [thread:$0]  %s247, 1024, %s249, %s238, 64, 64, 4
        $region44: #{tpu_custom_call.1} parent=39 // pred_fallthru
          _
      $region40: #{tpu_custom_call.1} parent=5 // pred_fallthru
        _
      %p255 = scmp.le.s32.totalorder 1, %s19
      %p256 = scmp.lt.s32.totalorder %s19, 3
      %p257 = pnand %p255, %p256
      %p258 = pneg %p257
      // Predicated region
      $region45: #{tpu_custom_call.1} parent=5 // pred_check
        _
      $region46: #{tpu_custom_call.1} parent=5 // pred_check_branch
        %260 = sbr.rel (%p257) target = $region48
      $region47: #{tpu_custom_call.1} parent=5 // pred_region
        %s261 = ssub.s32 %s19, 1
        %s262 = sand.u32 %s32, 1
        %s263 = scalar_lea.sflag [#allocation3], %s262
        %s264 = sand.u32 %s32, 1
        %s265 = smul.addr %s264, 64
        %s266 = scalar_lea.vmem [#allocation2], %s265
        // Predicated region
        $region49: #{tpu_custom_call.1} parent=47 // pred_check
          %p267 = pneg %p45
        $region50: #{tpu_custom_call.1} parent=47 // pred_check_branch
          %269 = sbr.rel (%p267) target = $region52
        $region51: #{tpu_custom_call.1} parent=47 // pred_region
          %270 = dma.done %s263, 1024
        $region52: #{tpu_custom_call.1} parent=47 // pred_fallthru
          _
        %s271 = sand.u32 %s32, 1
        %s272 = scalar_lea.sflag [#allocation3], %s271
        %s273 = sand.u32 %s32, 1
        %s274 = smul.addr %s273, 64
        %s275 = scalar_lea.vmem [#allocation2], %s274
        %p276 = pneg %p45
        %p277 = pneg %p42
        %p278 = pneg %p66
        %p279 = pneg %p63
        %p280 = pneg %p87
        %p281 = pneg %p84
        %p282 = pneg %p108
        %p283 = pneg %p105
        %p284 = pneg %p129
        %p285 = pneg %p126
        %p286 = pneg %p150
        %p287 = pneg %p147
        %p288 = pneg %p171
        %p289 = pneg %p168
        %p290 = pneg %p197
        %p291 = pneg %p194
        %s292 = sand.u32 %s184, 1
        %s293 = scalar_lea.sflag [#allocation4], %s292
        %s294 = sand.u32 %s184, 1
        %s295 = smul.addr %s294, 64
        %s296 = scalar_lea.vmem [#allocation5], %s295
        %s297 = smul.u32 16, %s24
        %s298 = smul.u32 16, %s24
        %v300 = vld [vmem:[%s266] sm:$0xf]
        %v301 = vld [vmem:[%s266 + $0x4] sm:$0xf]
        %v302 = vld [vmem:[%s266 + $0x8] sm:$0xf]
        %v303 = vld [vmem:[%s266 + $0xc] sm:$0xf]
        %v304 = vld [vmem:[%s266 + $0x10] sm:$0xf]
        %v305 = vld [vmem:[%s266 + $0x14] sm:$0xf]
        %v306 = vld [vmem:[%s266 + $0x18] sm:$0xf]
        %v307 = vld [vmem:[%s266 + $0x1c] sm:$0xf]
        %v308 = vld [vmem:[%s266 + $0x20] sm:$0xf]
        %v309 = vld [vmem:[%s266 + $0x24] sm:$0xf]
        %v310 = vld [vmem:[%s266 + $0x28] sm:$0xf]
        %v311 = vld [vmem:[%s266 + $0x2c] sm:$0xf]
        %v312 = vld [vmem:[%s266 + $0x30] sm:$0xf]
        %v313 = vld [vmem:[%s266 + $0x34] sm:$0xf]
        %v314 = vld [vmem:[%s266 + $0x38] sm:$0xf]
        %v315 = vld [vmem:[%s266 + $0x3c] sm:$0xf]
        %v316 = vld [vmem:[%s1] sm:$0xf]
        %v317 = vld [vmem:[%s1 + $0x4] sm:$0xf]
        %v318 = vld [vmem:[%s1 + $0x8] sm:$0xf]
        %v319 = vld [vmem:[%s1 + $0xc] sm:$0xf]
        %v320 = vld [vmem:[%s1 + $0x10] sm:$0xf]
        %v321 = vld [vmem:[%s1 + $0x14] sm:$0xf]
        %v322 = vld [vmem:[%s1 + $0x18] sm:$0xf]
        %v323 = vld [vmem:[%s1 + $0x1c] sm:$0xf]
        %v324 = vld [vmem:[%s1 + $0x20] sm:$0xf]
        %v325 = vld [vmem:[%s1 + $0x24] sm:$0xf]
        %v326 = vld [vmem:[%s1 + $0x28] sm:$0xf]
        %v327 = vld [vmem:[%s1 + $0x2c] sm:$0xf]
        %v328 = vld [vmem:[%s1 + $0x30] sm:$0xf]
        %v329 = vld [vmem:[%s1 + $0x34] sm:$0xf]
        %v330 = vld [vmem:[%s1 + $0x38] sm:$0xf]
        %v331 = vld [vmem:[%s1 + $0x3c] sm:$0xf]
        %v332 = vld [vmem:[%s2] sm:$0x1]
        %v334 = vlaneseq
        %v335 = vshrl.u32 %v334, 7
        %v336 = vsub.s32 0, %v335
        %v337 = vrot.slane %v332, %v336
        %v355 = vunpack.c.l.b16 %v300
        %v356 = vunpack.c.l.b16 %v301
        %v357 = vunpack.c.l.b16 %v302
        %v358 = vunpack.c.l.b16 %v303
        %v359 = vunpack.c.l.b16 %v304
        %v360 = vunpack.c.l.b16 %v305
        %v361 = vunpack.c.l.b16 %v306
        %v362 = vunpack.c.l.b16 %v307
        %v363 = vunpack.c.l.b16 %v308
        %v364 = vunpack.c.l.b16 %v309
        %v365 = vunpack.c.l.b16 %v310
        %v366 = vunpack.c.l.b16 %v311
        %v367 = vunpack.c.l.b16 %v312
        %v368 = vunpack.c.l.b16 %v313
        %v369 = vunpack.c.l.b16 %v314
        %v370 = vunpack.c.l.b16 %v315
        %v371 = vpack.c.b16 %v356, %v355
        %v372 = vpack.c.b16 %v358, %v357
        %v373 = vpack.c.b16 %v360, %v359
        %v374 = vpack.c.b16 %v362, %v361
        %v375 = vpack.c.b16 %v364, %v363
        %v376 = vpack.c.b16 %v366, %v365
        %v377 = vpack.c.b16 %v368, %v367
        %v378 = vpack.c.b16 %v370, %v369
        %v403 = vunpack.c.l.b16 %v316
        %v404 = vunpack.c.l.b16 %v317
        %v405 = vunpack.c.l.b16 %v318
        %v406 = vunpack.c.l.b16 %v319
        %v407 = vunpack.c.l.b16 %v320
        %v408 = vunpack.c.l.b16 %v321
        %v409 = vunpack.c.l.b16 %v322
        %v410 = vunpack.c.l.b16 %v323
        %v411 = vunpack.c.l.b16 %v324
        %v412 = vunpack.c.l.b16 %v325
        %v413 = vunpack.c.l.b16 %v326
        %v414 = vunpack.c.l.b16 %v327
        %v415 = vunpack.c.l.b16 %v328
        %v416 = vunpack.c.l.b16 %v329
        %v417 = vunpack.c.l.b16 %v330
        %v418 = vunpack.c.l.b16 %v331
        %v419 = vpack.c.b16 %v404, %v403
        %v420 = vpack.c.b16 %v406, %v405
        %v421 = vpack.c.b16 %v408, %v407
        %v422 = vpack.c.b16 %v410, %v409
        %v423 = vpack.c.b16 %v412, %v411
        %v424 = vpack.c.b16 %v414, %v413
        %v425 = vpack.c.b16 %v416, %v415
        %v426 = vpack.c.b16 %v418, %v417
        %435 = vmatprep.subr.bf16.mxu0 0
        %436 = vmatpush1.bf16.msra.mxu0 %v419
        %437 = vmatprep.subr.bf16.mxu0 0
        %438 = vmatpush1.bf16.msra.mxu0 %v420
        %439 = vmatprep.subr.bf16.mxu0 0
        %440 = vmatpush1.bf16.msra.mxu0 %v421
        %441 = vmatprep.subr.bf16.mxu0 0
        %442 = vmatpush1.bf16.msra.mxu0 %v422
        %443 = vmatprep.subr.bf16.mxu0 0
        %444 = vmatpush1.bf16.msra.mxu0 %v423
        %445 = vmatprep.subr.bf16.mxu0 0
        %446 = vmatpush1.bf16.msra.mxu0 %v424
        %447 = vmatprep.subr.bf16.mxu0 0
        %448 = vmatpush1.bf16.msra.mxu0 %v425
        %449 = vmatprep.subr.bf16.mxu0 0
        %450 = vmatpush1.bf16.msra.mxu0 %v426
        %451 = vmatprep.subr.bf16.mxu0 0
        %452 = vmatpush1.bf16.msra.mxu0 0
        %453 = vmatprep.subr.bf16.mxu0 0
        %454 = vmatpush1.bf16.msra.mxu0 0
        %455 = vmatprep.subr.bf16.mxu0 0
        %456 = vmatpush1.bf16.msra.mxu0 0
        %457 = vmatprep.subr.bf16.mxu0 0
        %458 = vmatpush1.bf16.msra.mxu0 0
        %459 = vmatprep.subr.bf16.mxu0 0
        %460 = vmatpush1.bf16.msra.mxu0 0
        %461 = vmatprep.subr.bf16.mxu0 0
        %462 = vmatpush1.bf16.msra.mxu0 0
        %463 = vmatprep.subr.bf16.mxu0 0
        %464 = vmatpush1.bf16.msra.mxu0 0
        %465 = vmatprep.subr.bf16.mxu0 0
        %466 = vmatpush1.bf16.msra.mxu0 0
        %467 = vmatprep.mubr.bf16.mxu0 0
        %468 = vmatmul.mubr.bf16.gmra.mrb[0].mxu0 %v371
        %v469 = vpop.f32.mrb[0].mxu0
        %v470 = vadd.f32 %v337, %v469
        %v471 = vpop.f32.mrb[0].mxu0
        %v472 = vpop.f32.mrb[0].mxu0
        %v473 = vadd.f32 %v337, %v472
        %v474 = vpop.f32.mrb[0].mxu0
        %475 = vmatprep.mubr.bf16.mxu0 0
        %476 = vmatmul.mubr.bf16.gmra.mrb[0].mxu0 %v372
        %v477 = vpop.f32.mrb[0].mxu0
        %v478 = vadd.f32 %v337, %v477
        %v479 = vpop.f32.mrb[0].mxu0
        %v480 = vpop.f32.mrb[0].mxu0
        %v481 = vadd.f32 %v337, %v480
        %v482 = vpop.f32.mrb[0].mxu0
        %483 = vmatprep.mubr.bf16.mxu0 0
        %484 = vmatmul.mubr.bf16.gmra.mrb[0].mxu0 %v373
        %v485 = vpop.f32.mrb[0].mxu0
        %v486 = vadd.f32 %v337, %v485
        %v487 = vpop.f32.mrb[0].mxu0
        %v488 = vpop.f32.mrb[0].mxu0
        %v489 = vadd.f32 %v337, %v488
        %v490 = vpop.f32.mrb[0].mxu0
        %491 = vmatprep.mubr.bf16.mxu0 0
        %492 = vmatmul.mubr.bf16.gmra.mrb[0].mxu0 %v374
        %v493 = vpop.f32.mrb[0].mxu0
        %v494 = vadd.f32 %v337, %v493
        %v495 = vpop.f32.mrb[0].mxu0
        %v496 = vpop.f32.mrb[0].mxu0
        %v497 = vadd.f32 %v337, %v496
        %v498 = vpop.f32.mrb[0].mxu0
        %499 = vmatprep.mubr.bf16.mxu0 0
        %500 = vmatmul.mubr.bf16.gmra.mrb[0].mxu0 %v375
        %v501 = vpop.f32.mrb[0].mxu0
        %v502 = vadd.f32 %v337, %v501
        %v503 = vpop.f32.mrb[0].mxu0
        %v504 = vpop.f32.mrb[0].mxu0
        %v505 = vadd.f32 %v337, %v504
        %v506 = vpop.f32.mrb[0].mxu0
        %507 = vmatprep.mubr.bf16.mxu0 0
        %508 = vmatmul.mubr.bf16.gmra.mrb[0].mxu0 %v376
        %v509 = vpop.f32.mrb[0].mxu0
        %v510 = vadd.f32 %v337, %v509
        %v511 = vpop.f32.mrb[0].mxu0
        %v512 = vpop.f32.mrb[0].mxu0
        %v513 = vadd.f32 %v337, %v512
        %v514 = vpop.f32.mrb[0].mxu0
        %515 = vmatprep.mubr.bf16.mxu0 0
        %516 = vmatmul.mubr.bf16.gmra.mrb[0].mxu0 %v377
        %v517 = vpop.f32.mrb[0].mxu0
        %v518 = vadd.f32 %v337, %v517
        %v519 = vpop.f32.mrb[0].mxu0
        %v520 = vpop.f32.mrb[0].mxu0
        %v521 = vadd.f32 %v337, %v520
        %v522 = vpop.f32.mrb[0].mxu0
        %523 = vmatprep.mubr.bf16.mxu0 0
        %524 = vmatmul.mubr.bf16.gmra.mrb[0].mxu0 %v378
        %v525 = vpop.f32.mrb[0].mxu0
        %v526 = vadd.f32 %v337, %v525
        %v527 = vpop.f32.mrb[0].mxu0
        %v528 = vpop.f32.mrb[0].mxu0
        %v529 = vadd.f32 %v337, %v528
        %v530 = vpop.f32.mrb[0].mxu0
        %531 = vdwg.mxu0
        %v532 = vmax.f32 %v470, 0.0
        %v533 = vmax.f32 %v473, 0.0
        %v534 = vmax.f32 %v478, 0.0
        %v535 = vmax.f32 %v481, 0.0
        %v536 = vmax.f32 %v486, 0.0
        %v537 = vmax.f32 %v489, 0.0
        %v538 = vmax.f32 %v494, 0.0
        %v539 = vmax.f32 %v497, 0.0
        %v540 = vmax.f32 %v502, 0.0
        %v541 = vmax.f32 %v505, 0.0
        %v542 = vmax.f32 %v510, 0.0
        %v543 = vmax.f32 %v513, 0.0
        %v544 = vmax.f32 %v518, 0.0
        %v545 = vmax.f32 %v521, 0.0
        %v546 = vmax.f32 %v526, 0.0
        %v547 = vmax.f32 %v529, 0.0
        %v548 = vlaneseq
        %v549 = vshrl.u32 %v548, 7
        %v550 = vadd.s32 %v549, 8
        %v551 = vadd.s32 %v549, 16
        %v552 = vadd.s32 %v549, 24
        %v553 = vadd.s32 %v549, 32
        %v554 = vadd.s32 %v549, 40
        %v555 = vadd.s32 %v549, 48
        %v556 = vadd.s32 %v549, 56
        %v557 = vadd.s32 %v549, 64
        %v558 = vadd.s32 %v549, 72
        %v559 = vadd.s32 %v549, 80
        %v560 = vadd.s32 %v549, 88
        %v561 = vadd.s32 %v549, 96
        %v562 = vadd.s32 %v549, 104
        %v563 = vadd.s32 %v549, 112
        %v564 = vadd.s32 %v549, 120
        %vm565 = vcmp.lt.s32.totalorder %v549, 0
        %v566 = vsub.s32 0, %v549
        %v567 = vsel %vm565, %v566, %v549
        %v568 = vshrl.u32 %v567, 3
        %v569 = vand.u32 %v567, 7
        %v570 = vsub.s32 0, %v569
        %v571 = vsel %vm565, %v570, %v569
        %vm572 = vcmp.lt.s32.totalorder %v550, 0
        %v573 = vsub.s32 0, %v550
        %v574 = vsel %vm572, %v573, %v550
        %v575 = vshrl.u32 %v574, 3
        %v576 = vand.u32 %v574, 7
        %v577 = vsub.s32 0, %v576
        %v578 = vsel %vm572, %v577, %v576
        %vm579 = vcmp.lt.s32.totalorder %v551, 0
        %v580 = vsub.s32 0, %v551
        %v581 = vsel %vm579, %v580, %v551
        %v582 = vshrl.u32 %v581, 3
        %v583 = vand.u32 %v581, 7
        %v584 = vsub.s32 0, %v583
        %v585 = vsel %vm579, %v584, %v583
        %vm586 = vcmp.lt.s32.totalorder %v552, 0
        %v587 = vsub.s32 0, %v552
        %v588 = vsel %vm586, %v587, %v552
        %v589 = vshrl.u32 %v588, 3
        %v590 = vand.u32 %v588, 7
        %v591 = vsub.s32 0, %v590
        %v592 = vsel %vm586, %v591, %v590
        %vm593 = vcmp.lt.s32.totalorder %v553, 0
        %v594 = vsub.s32 0, %v553
        %v595 = vsel %vm593, %v594, %v553
        %v596 = vshrl.u32 %v595, 3
        %v597 = vand.u32 %v595, 7
        %v598 = vsub.s32 0, %v597
        %v599 = vsel %vm593, %v598, %v597
        %vm600 = vcmp.lt.s32.totalorder %v554, 0
        %v601 = vsub.s32 0, %v554
        %v602 = vsel %vm600, %v601, %v554
        %v603 = vshrl.u32 %v602, 3
        %v604 = vand.u32 %v602, 7
        %v605 = vsub.s32 0, %v604
        %v606 = vsel %vm600, %v605, %v604
        %vm607 = vcmp.lt.s32.totalorder %v555, 0
        %v608 = vsub.s32 0, %v555
        %v609 = vsel %vm607, %v608, %v555
        %v610 = vshrl.u32 %v609, 3
        %v611 = vand.u32 %v609, 7
        %v612 = vsub.s32 0, %v611
        %v613 = vsel %vm607, %v612, %v611
        %vm614 = vcmp.lt.s32.totalorder %v556, 0
        %v615 = vsub.s32 0, %v556
        %v616 = vsel %vm614, %v615, %v556
        %v617 = vshrl.u32 %v616, 3
        %v618 = vand.u32 %v616, 7
        %v619 = vsub.s32 0, %v618
        %v620 = vsel %vm614, %v619, %v618
        %vm621 = vcmp.lt.s32.totalorder %v557, 0
        %v622 = vsub.s32 0, %v557
        %v623 = vsel %vm621, %v622, %v557
        %v624 = vshrl.u32 %v623, 3
        %v625 = vand.u32 %v623, 7
        %v626 = vsub.s32 0, %v625
        %v627 = vsel %vm621, %v626, %v625
        %vm628 = vcmp.lt.s32.totalorder %v558, 0
        %v629 = vsub.s32 0, %v558
        %v630 = vsel %vm628, %v629, %v558
        %v631 = vshrl.u32 %v630, 3
        %v632 = vand.u32 %v630, 7
        %v633 = vsub.s32 0, %v632
        %v634 = vsel %vm628, %v633, %v632
        %vm635 = vcmp.lt.s32.totalorder %v559, 0
        %v636 = vsub.s32 0, %v559
        %v637 = vsel %vm635, %v636, %v559
        %v638 = vshrl.u32 %v637, 3
        %v639 = vand.u32 %v637, 7
        %v640 = vsub.s32 0, %v639
        %v641 = vsel %vm635, %v640, %v639
        %vm642 = vcmp.lt.s32.totalorder %v560, 0
        %v643 = vsub.s32 0, %v560
        %v644 = vsel %vm642, %v643, %v560
        %v645 = vshrl.u32 %v644, 3
        %v646 = vand.u32 %v644, 7
        %v647 = vsub.s32 0, %v646
        %v648 = vsel %vm642, %v647, %v646
        %vm649 = vcmp.lt.s32.totalorder %v561, 0
        %v650 = vsub.s32 0, %v561
        %v651 = vsel %vm649, %v650, %v561
        %v652 = vshrl.u32 %v651, 3
        %v653 = vand.u32 %v651, 7
        %v654 = vsub.s32 0, %v653
        %v655 = vsel %vm649, %v654, %v653
        %vm656 = vcmp.lt.s32.totalorder %v562, 0
        %v657 = vsub.s32 0, %v562
        %v658 = vsel %vm656, %v657, %v562
        %v659 = vshrl.u32 %v658, 3
        %v660 = vand.u32 %v658, 7
        %v661 = vsub.s32 0, %v660
        %v662 = vsel %vm656, %v661, %v660
        %vm663 = vcmp.lt.s32.totalorder %v563, 0
        %v664 = vsub.s32 0, %v563
        %v665 = vsel %vm663, %v664, %v563
        %v666 = vshrl.u32 %v665, 3
        %v667 = vand.u32 %v665, 7
        %v668 = vsub.s32 0, %v667
        %v669 = vsel %vm663, %v668, %v667
        %vm670 = vcmp.lt.s32.totalorder %v564, 0
        %v671 = vsub.s32 0, %v564
        %v672 = vsel %vm670, %v671, %v564
        %v673 = vshrl.u32 %v672, 3
        %v674 = vand.u32 %v672, 7
        %v675 = vsub.s32 0, %v674
        %v676 = vsel %vm670, %v675, %v674
        %vm677 = vcmp.ne.s32.totalorder %v571, 0
        %vm678 = vcmp.ne.s32.totalorder %v578, 0
        %vm679 = vcmp.ne.s32.totalorder %v585, 0
        %vm680 = vcmp.ne.s32.totalorder %v592, 0
        %vm681 = vcmp.ne.s32.totalorder %v599, 0
        %vm682 = vcmp.ne.s32.totalorder %v606, 0
        %vm683 = vcmp.ne.s32.totalorder %v613, 0
        %vm684 = vcmp.ne.s32.totalorder %v620, 0
        %vm685 = vcmp.ne.s32.totalorder %v627, 0
        %vm686 = vcmp.ne.s32.totalorder %v634, 0
        %vm687 = vcmp.ne.s32.totalorder %v641, 0
        %vm688 = vcmp.ne.s32.totalorder %v648, 0
        %vm689 = vcmp.ne.s32.totalorder %v655, 0
        %vm690 = vcmp.ne.s32.totalorder %v662, 0
        %vm691 = vcmp.ne.s32.totalorder %v669, 0
        %vm692 = vcmp.ne.s32.totalorder %v676, 0
        %vm693 = vcmp.lt.s32.totalorder %v571, 0
        %vm694 = vcmp.lt.s32.totalorder %v578, 0
        %vm695 = vcmp.lt.s32.totalorder %v585, 0
        %vm696 = vcmp.lt.s32.totalorder %v592, 0
        %vm697 = vcmp.lt.s32.totalorder %v599, 0
        %vm698 = vcmp.lt.s32.totalorder %v606, 0
        %vm699 = vcmp.lt.s32.totalorder %v613, 0
        %vm700 = vcmp.lt.s32.totalorder %v620, 0
        %vm701 = vcmp.lt.s32.totalorder %v627, 0
        %vm702 = vcmp.lt.s32.totalorder %v634, 0
        %vm703 = vcmp.lt.s32.totalorder %v641, 0
        %vm704 = vcmp.lt.s32.totalorder %v648, 0
        %vm705 = vcmp.lt.s32.totalorder %v655, 0
        %vm706 = vcmp.lt.s32.totalorder %v662, 0
        %vm707 = vcmp.lt.s32.totalorder %v669, 0
        %vm708 = vcmp.lt.s32.totalorder %v676, 0
        %vm709 = vmand %vm693, %vm677
        %vm710 = vmand %vm694, %vm678
        %vm711 = vmand %vm695, %vm679
        %vm712 = vmand %vm696, %vm680
        %vm713 = vmand %vm697, %vm681
        %vm714 = vmand %vm698, %vm682
        %vm715 = vmand %vm699, %vm683
        %vm716 = vmand %vm700, %vm684
        %vm717 = vmand %vm701, %vm685
        %vm718 = vmand %vm702, %vm686
        %vm719 = vmand %vm703, %vm687
        %vm720 = vmand %vm704, %vm688
        %vm721 = vmand %vm705, %vm689
        %vm722 = vmand %vm706, %vm690
        %vm723 = vmand %vm707, %vm691
        %vm724 = vmand %vm708, %vm692
        %v725 = vadd.s32 %v571, 8
        %v726 = vadd.s32 %v578, 8
        %v727 = vadd.s32 %v585, 8
        %v728 = vadd.s32 %v592, 8
        %v729 = vadd.s32 %v599, 8
        %v730 = vadd.s32 %v606, 8
        %v731 = vadd.s32 %v613, 8
        %v732 = vadd.s32 %v620, 8
        %v733 = vadd.s32 %v627, 8
        %v734 = vadd.s32 %v634, 8
        %v735 = vadd.s32 %v641, 8
        %v736 = vadd.s32 %v648, 8
        %v737 = vadd.s32 %v655, 8
        %v738 = vadd.s32 %v662, 8
        %v739 = vadd.s32 %v669, 8
        %v740 = vadd.s32 %v676, 8
        %v741 = vsel %vm709, %v725, %v571
        %v742 = vsel %vm710, %v726, %v578
        %v743 = vsel %vm711, %v727, %v585
        %v744 = vsel %vm712, %v728, %v592
        %v745 = vsel %vm713, %v729, %v599
        %v746 = vsel %vm714, %v730, %v606
        %v747 = vsel %vm715, %v731, %v613
        %v748 = vsel %vm716, %v732, %v620
        %v749 = vsel %vm717, %v733, %v627
        %v750 = vsel %vm718, %v734, %v634
        %v751 = vsel %vm719, %v735, %v641
        %v752 = vsel %vm720, %v736, %v648
        %v753 = vsel %vm721, %v737, %v655
        %v754 = vsel %vm722, %v738, %v662
        %v755 = vsel %vm723, %v739, %v669
        %v756 = vsel %vm724, %v740, %v676
        %v757 = vpack.c.bf16 %v533, %v532
        %v758 = vpack.c.bf16 %v535, %v534
        %v759 = vpack.c.bf16 %v537, %v536
        %v760 = vpack.c.bf16 %v539, %v538
        %v761 = vpack.c.bf16 %v541, %v540
        %v762 = vpack.c.bf16 %v543, %v542
        %v763 = vpack.c.bf16 %v545, %v544
        %v764 = vpack.c.bf16 %v547, %v546
        %s765 = scalar_lea.vmem %s3, 16
        %v766 = vld [vmem:[%s765] sm:$0xf]
        %v767 = vld [vmem:[%s765 + $0x4] sm:$0xf]
        %v768 = vld [vmem:[%s765 + $0x8] sm:$0xf]
        %v769 = vld [vmem:[%s765 + $0xc] sm:$0xf]
        %v770 = vrot.slane %v532, 7
        %v771 = vrot.slane %v533, 7
        %v772 = vrot.slane %v534, 7
        %v773 = vrot.slane %v535, 7
        %v774 = vrot.slane %v536, 7
        %v775 = vrot.slane %v537, 7
        %v776 = vrot.slane %v538, 7
        %v777 = vrot.slane %v539, 7
        %v778 = vrot.slane %v540, 7
        %v779 = vrot.slane %v541, 7
        %v780 = vrot.slane %v542, 7
        %v781 = vrot.slane %v543, 7
        %v782 = vrot.slane %v544, 7
        %v783 = vrot.slane %v545, 7
        %v784 = vrot.slane %v546, 7
        %v785 = vrot.slane %v547, 7
        %vm786 = vcmp.lt.s32.totalorder %v549, 1
        %v787 = vsel %vm786, %v784, %v785
        %v788 = vsel %vm786, %v783, %v784
        %v789 = vsel %vm786, %v782, %v783
        %v790 = vsel %vm786, %v781, %v782
        %v791 = vsel %vm786, %v780, %v781
        %v792 = vsel %vm786, %v779, %v780
        %v793 = vsel %vm786, %v778, %v779
        %v794 = vsel %vm786, %v777, %v778
        %v795 = vsel %vm786, %v776, %v777
        %v796 = vsel %vm786, %v775, %v776
        %v797 = vsel %vm786, %v774, %v775
        %v798 = vsel %vm786, %v773, %v774
        %v799 = vsel %vm786, %v772, %v773
        %v800 = vsel %vm786, %v771, %v772
        %v801 = vsel %vm786, %v770, %v771
        %v802 = vsel %vm786, %v785, %v770
        %vm803 = vcmp.ge.s32.totalorder %v741, 1
        %vm804 = vcmp.ge.s32.totalorder %v742, 1
        %vm805 = vcmp.ge.s32.totalorder %v743, 1
        %vm806 = vcmp.ge.s32.totalorder %v744, 1
        %vm807 = vcmp.ge.s32.totalorder %v745, 1
        %vm808 = vcmp.ge.s32.totalorder %v746, 1
        %vm809 = vcmp.ge.s32.totalorder %v747, 1
        %vm810 = vcmp.ge.s32.totalorder %v748, 1
        %vm811 = vcmp.ge.s32.totalorder %v749, 1
        %vm812 = vcmp.ge.s32.totalorder %v750, 1
        %vm813 = vcmp.ge.s32.totalorder %v751, 1
        %vm814 = vcmp.ge.s32.totalorder %v752, 1
        %vm815 = vcmp.ge.s32.totalorder %v753, 1
        %vm816 = vcmp.ge.s32.totalorder %v754, 1
        %vm817 = vcmp.ge.s32.totalorder %v755, 1
        %vm818 = vcmp.ge.s32.totalorder %v756, 1
        %v819 = vsel %vm803, 1, 0
        %v820 = vsel %vm804, 1, 0
        %v821 = vsel %vm805, 1, 0
        %v822 = vsel %vm806, 1, 0
        %v823 = vsel %vm807, 1, 0
        %v824 = vsel %vm808, 1, 0
        %v825 = vsel %vm809, 1, 0
        %v826 = vsel %vm810, 1, 0
        %v827 = vsel %vm811, 1, 0
        %v828 = vsel %vm812, 1, 0
        %v829 = vsel %vm813, 1, 0
        %v830 = vsel %vm814, 1, 0
        %v831 = vsel %vm815, 1, 0
        %v832 = vsel %vm816, 1, 0
        %v833 = vsel %vm817, 1, 0
        %v834 = vsel %vm818, 1, 0
        %vm835 = vcmp.eq.s32.totalorder %v819, 1
        %vm836 = vcmp.eq.s32.totalorder %v820, 1
        %vm837 = vcmp.eq.s32.totalorder %v821, 1
        %vm838 = vcmp.eq.s32.totalorder %v822, 1
        %vm839 = vcmp.eq.s32.totalorder %v823, 1
        %vm840 = vcmp.eq.s32.totalorder %v824, 1
        %vm841 = vcmp.eq.s32.totalorder %v825, 1
        %vm842 = vcmp.eq.s32.totalorder %v826, 1
        %vm843 = vcmp.eq.s32.totalorder %v827, 1
        %vm844 = vcmp.eq.s32.totalorder %v828, 1
        %vm845 = vcmp.eq.s32.totalorder %v829, 1
        %vm846 = vcmp.eq.s32.totalorder %v830, 1
        %vm847 = vcmp.eq.s32.totalorder %v831, 1
        %vm848 = vcmp.eq.s32.totalorder %v832, 1
        %vm849 = vcmp.eq.s32.totalorder %v833, 1
        %vm850 = vcmp.eq.s32.totalorder %v834, 1
        %v851 = vsel %vm835, %v802, 0.0
        %v852 = vsel %vm836, %v801, 0.0
        %v853 = vsel %vm837, %v800, 0.0
        %v854 = vsel %vm838, %v799, 0.0
        %v855 = vsel %vm839, %v798, 0.0
        %v856 = vsel %vm840, %v797, 0.0
        %v857 = vsel %vm841, %v796, 0.0
        %v858 = vsel %vm842, %v795, 0.0
        %v859 = vsel %vm843, %v794, 0.0
        %v860 = vsel %vm844, %v793, 0.0
        %v861 = vsel %vm845, %v792, 0.0
        %v862 = vsel %vm846, %v791, 0.0
        %v863 = vsel %vm847, %v790, 0.0
        %v864 = vsel %vm848, %v789, 0.0
        %v865 = vsel %vm849, %v788, 0.0
        %v866 = vsel %vm850, %v787, 0.0
        %v867 = vpack.c.bf16 %v852, %v851
        %v868 = vpack.c.bf16 %v854, %v853
        %v869 = vpack.c.bf16 %v856, %v855
        %v870 = vpack.c.bf16 %v858, %v857
        %v871 = vpack.c.bf16 %v860, %v859
        %v872 = vpack.c.bf16 %v862, %v861
        %v873 = vpack.c.bf16 %v864, %v863
        %v874 = vpack.c.bf16 %v866, %v865
        %v875 = vld [vmem:[%s3] sm:$0xf]
        %v876 = vld [vmem:[%s3 + $0x4] sm:$0xf]
        %v877 = vld [vmem:[%s3 + $0x8] sm:$0xf]
        %v878 = vld [vmem:[%s3 + $0xc] sm:$0xf]
        %v883 = vunpack.c.l.b16 %v875
        %v884 = vunpack.c.l.b16 %v876
        %v885 = vunpack.c.l.b16 %v877
        %v886 = vunpack.c.l.b16 %v878
        %v887 = vpack.c.b16 %v884, %v883
        %v888 = vpack.c.b16 %v886, %v885
        %vm891 = vcmask 261120
        %v893 = vsel %vm891, %v867, 0
        %v896 = vsel %vm891, %v868, 0
        %v899 = vsel %vm891, %v869, 0
        %v902 = vsel %vm891, %v870, 0
        %v905 = vsel %vm891, %v871, 0
        %v908 = vsel %vm891, %v872, 0
        %v911 = vsel %vm891, %v873, 0
        %v914 = vsel %vm891, %v874, 0
        %916 = vmatprep.subr.bf16.mxu0 0
        %917 = vmatpush1.bf16.msra.mxu0 %v887
        %918 = vmatprep.subr.bf16.mxu0 0
        %919 = vmatpush1.bf16.msra.mxu0 %v888
        %920 = vmatprep.subr.bf16.mxu0 0
        %921 = vmatpush1.bf16.msra.mxu0 0
        %922 = vmatprep.subr.bf16.mxu0 0
        %923 = vmatpush1.bf16.msra.mxu0 0
        %924 = vmatprep.subr.bf16.mxu0 0
        %925 = vmatpush1.bf16.msra.mxu0 0
        %926 = vmatprep.subr.bf16.mxu0 0
        %927 = vmatpush1.bf16.msra.mxu0 0
        %928 = vmatprep.subr.bf16.mxu0 0
        %929 = vmatpush1.bf16.msra.mxu0 0
        %930 = vmatprep.subr.bf16.mxu0 0
        %931 = vmatpush1.bf16.msra.mxu0 0
        %932 = vmatprep.subr.bf16.mxu0 0
        %933 = vmatpush1.bf16.msra.mxu0 0
        %934 = vmatprep.subr.bf16.mxu0 0
        %935 = vmatpush1.bf16.msra.mxu0 0
        %936 = vmatprep.subr.bf16.mxu0 0
        %937 = vmatpush1.bf16.msra.mxu0 0
        %938 = vmatprep.subr.bf16.mxu0 0
        %939 = vmatpush1.bf16.msra.mxu0 0
        %940 = vmatprep.subr.bf16.mxu0 0
        %941 = vmatpush1.bf16.msra.mxu0 0
        %942 = vmatprep.subr.bf16.mxu0 0
        %943 = vmatpush1.bf16.msra.mxu0 0
        %944 = vmatprep.subr.bf16.mxu0 0
        %945 = vmatpush1.bf16.msra.mxu0 0
        %946 = vmatprep.subr.bf16.mxu0 0
        %947 = vmatpush1.bf16.msra.mxu0 0
        %948 = vmatprep.mubr.bf16.mxu0 0
        %949 = vmatmul.mubr.bf16.gmra.mrb[0].mxu0 %v893
        %v950 = vpop.f32.mrb[0].mxu0
        %v951 = vadd.f32 0.0, %v950
        %v952 = vpop.f32.mrb[0].mxu0
        %v953 = vpop.f32.mrb[0].mxu0
        %v954 = vadd.f32 0.0, %v953
        %v955 = vpop.f32.mrb[0].mxu0
        %956 = vmatprep.mubr.bf16.mxu0 0
        %957 = vmatmul.mubr.bf16.gmra.mrb[0].mxu0 %v896
        %v958 = vpop.f32.mrb[0].mxu0
        %v959 = vadd.f32 0.0, %v958
        %v960 = vpop.f32.mrb[0].mxu0
        %v961 = vpop.f32.mrb[0].mxu0
        %v962 = vadd.f32 0.0, %v961
        %v963 = vpop.f32.mrb[0].mxu0
        %964 = vmatprep.mubr.bf16.mxu0 0
        %965 = vmatmul.mubr.bf16.gmra.mrb[0].mxu0 %v899
        %v966 = vpop.f32.mrb[0].mxu0
        %v967 = vadd.f32 0.0, %v966
        %v968 = vpop.f32.mrb[0].mxu0
        %v969 = vpop.f32.mrb[0].mxu0
        %v970 = vadd.f32 0.0, %v969
        %v971 = vpop.f32.mrb[0].mxu0
        %972 = vmatprep.mubr.bf16.mxu0 0
        %973 = vmatmul.mubr.bf16.gmra.mrb[0].mxu0 %v902
        %v974 = vpop.f32.mrb[0].mxu0
        %v975 = vadd.f32 0.0, %v974
        %v976 = vpop.f32.mrb[0].mxu0
        %v977 = vpop.f32.mrb[0].mxu0
        %v978 = vadd.f32 0.0, %v977
        %v979 = vpop.f32.mrb[0].mxu0
        %980 = vmatprep.mubr.bf16.mxu0 0
        %981 = vmatmul.mubr.bf16.gmra.mrb[0].mxu0 %v905
        %v982 = vpop.f32.mrb[0].mxu0
        %v983 = vadd.f32 0.0, %v982
        %v984 = vpop.f32.mrb[0].mxu0
        %v985 = vpop.f32.mrb[0].mxu0
        %v986 = vadd.f32 0.0, %v985
        %v987 = vpop.f32.mrb[0].mxu0
        %988 = vmatprep.mubr.bf16.mxu0 0
        %989 = vmatmul.mubr.bf16.gmra.mrb[0].mxu0 %v908
        %v990 = vpop.f32.mrb[0].mxu0
        %v991 = vadd.f32 0.0, %v990
        %v992 = vpop.f32.mrb[0].mxu0
        %v993 = vpop.f32.mrb[0].mxu0
        %v994 = vadd.f32 0.0, %v993
        %v995 = vpop.f32.mrb[0].mxu0
        %996 = vmatprep.mubr.bf16.mxu0 0
        %997 = vmatmul.mubr.bf16.gmra.mrb[0].mxu0 %v911
        %v998 = vpop.f32.mrb[0].mxu0
        %v999 = vadd.f32 0.0, %v998
        %v1000 = vpop.f32.mrb[0].mxu0
        %v1001 = vpop.f32.mrb[0].mxu0
        %v1002 = vadd.f32 0.0, %v1001
        %v1003 = vpop.f32.mrb[0].mxu0
        %1004 = vmatprep.mubr.bf16.mxu0 0
        %1005 = vmatmul.mubr.bf16.gmra.mrb[0].mxu0 %v914
        %v1006 = vpop.f32.mrb[0].mxu0
        %v1007 = vadd.f32 0.0, %v1006
        %v1008 = vpop.f32.mrb[0].mxu0
        %v1009 = vpop.f32.mrb[0].mxu0
        %v1010 = vadd.f32 0.0, %v1009
        %v1011 = vpop.f32.mrb[0].mxu0
        %1012 = vdwg.mxu0
        %v1017 = vunpack.c.l.b16 %v766
        %v1018 = vunpack.c.l.b16 %v767
        %v1019 = vunpack.c.l.b16 %v768
        %v1020 = vunpack.c.l.b16 %v769
        %v1021 = vpack.c.b16 %v1018, %v1017
        %v1022 = vpack.c.b16 %v1020, %v1019
        %v1026 = vsel %vm891, %v757, 0
        %v1029 = vsel %vm891, %v758, 0
        %v1032 = vsel %vm891, %v759, 0
        %v1035 = vsel %vm891, %v760, 0
        %v1038 = vsel %vm891, %v761, 0
        %v1041 = vsel %vm891, %v762, 0
        %v1044 = vsel %vm891, %v763, 0
        %v1047 = vsel %vm891, %v764, 0
        %1049 = vmatprep.subr.bf16.mxu0 0
        %1050 = vmatpush1.bf16.msra.mxu0 %v1021
        %1051 = vmatprep.subr.bf16.mxu0 0
        %1052 = vmatpush1.bf16.msra.mxu0 %v1022
        %1053 = vmatprep.subr.bf16.mxu0 0
        %1054 = vmatpush1.bf16.msra.mxu0 0
        %1055 = vmatprep.subr.bf16.mxu0 0
        %1056 = vmatpush1.bf16.msra.mxu0 0
        %1057 = vmatprep.subr.bf16.mxu0 0
        %1058 = vmatpush1.bf16.msra.mxu0 0
        %1059 = vmatprep.subr.bf16.mxu0 0
        %1060 = vmatpush1.bf16.msra.mxu0 0
        %1061 = vmatprep.subr.bf16.mxu0 0
        %1062 = vmatpush1.bf16.msra.mxu0 0
        %1063 = vmatprep.subr.bf16.mxu0 0
        %1064 = vmatpush1.bf16.msra.mxu0 0
        %1065 = vmatprep.subr.bf16.mxu0 0
        %1066 = vmatpush1.bf16.msra.mxu0 0
        %1067 = vmatprep.subr.bf16.mxu0 0
        %1068 = vmatpush1.bf16.msra.mxu0 0
        %1069 = vmatprep.subr.bf16.mxu0 0
        %1070 = vmatpush1.bf16.msra.mxu0 0
        %1071 = vmatprep.subr.bf16.mxu0 0
        %1072 = vmatpush1.bf16.msra.mxu0 0
        %1073 = vmatprep.subr.bf16.mxu0 0
        %1074 = vmatpush1.bf16.msra.mxu0 0
        %1075 = vmatprep.subr.bf16.mxu0 0
        %1076 = vmatpush1.bf16.msra.mxu0 0
        %1077 = vmatprep.subr.bf16.mxu0 0
        %1078 = vmatpush1.bf16.msra.mxu0 0
        %1079 = vmatprep.subr.bf16.mxu0 0
        %1080 = vmatpush1.bf16.msra.mxu0 0
        %1081 = vmatprep.mubr.bf16.mxu0 0
        %1082 = vmatmul.mubr.bf16.gmra.mrb[0].mxu0 %v1026
        %v1083 = vpop.f32.mrb[0].mxu0
        %v1084 = vadd.f32 %v951, %v1083
        %v1085 = vpop.f32.mrb[0].mxu0
        %v1086 = vpop.f32.mrb[0].mxu0
        %v1087 = vadd.f32 %v954, %v1086
        %v1088 = vpop.f32.mrb[0].mxu0
        %1089 = vmatprep.mubr.bf16.mxu0 0
        %1090 = vmatmul.mubr.bf16.gmra.mrb[0].mxu0 %v1029
        %v1091 = vpop.f32.mrb[0].mxu0
        %v1092 = vadd.f32 %v959, %v1091
        %v1093 = vpop.f32.mrb[0].mxu0
        %v1094 = vpop.f32.mrb[0].mxu0
        %v1095 = vadd.f32 %v962, %v1094
        %v1096 = vpop.f32.mrb[0].mxu0
        %1097 = vmatprep.mubr.bf16.mxu0 0
        %1098 = vmatmul.mubr.bf16.gmra.mrb[0].mxu0 %v1032
        %v1099 = vpop.f32.mrb[0].mxu0
        %v1100 = vadd.f32 %v967, %v1099
        %v1101 = vpop.f32.mrb[0].mxu0
        %v1102 = vpop.f32.mrb[0].mxu0
        %v1103 = vadd.f32 %v970, %v1102
        %v1104 = vpop.f32.mrb[0].mxu0
        %1105 = vmatprep.mubr.bf16.mxu0 0
        %1106 = vmatmul.mubr.bf16.gmra.mrb[0].mxu0 %v1035
        %v1107 = vpop.f32.mrb[0].mxu0
        %v1108 = vadd.f32 %v975, %v1107
        %v1109 = vpop.f32.mrb[0].mxu0
        %v1110 = vpop.f32.mrb[0].mxu0
        %v1111 = vadd.f32 %v978, %v1110
        %v1112 = vpop.f32.mrb[0].mxu0
        %1113 = vmatprep.mubr.bf16.mxu0 0
        %1114 = vmatmul.mubr.bf16.gmra.mrb[0].mxu0 %v1038
        %v1115 = vpop.f32.mrb[0].mxu0
        %v1116 = vadd.f32 %v983, %v1115
        %v1117 = vpop.f32.mrb[0].mxu0
        %v1118 = vpop.f32.mrb[0].mxu0
        %v1119 = vadd.f32 %v986, %v1118
        %v1120 = vpop.f32.mrb[0].mxu0
        %1121 = vmatprep.mubr.bf16.mxu0 0
        %1122 = vmatmul.mubr.bf16.gmra.mrb[0].mxu0 %v1041
        %v1123 = vpop.f32.mrb[0].mxu0
        %v1124 = vadd.f32 %v991, %v1123
        %v1125 = vpop.f32.mrb[0].mxu0
        %v1126 = vpop.f32.mrb[0].mxu0
        %v1127 = vadd.f32 %v994, %v1126
        %v1128 = vpop.f32.mrb[0].mxu0
        %1129 = vmatprep.mubr.bf16.mxu0 0
        %1130 = vmatmul.mubr.bf16.gmra.mrb[0].mxu0 %v1044
        %v1131 = vpop.f32.mrb[0].mxu0
        %v1132 = vadd.f32 %v999, %v1131
        %v1133 = vpop.f32.mrb[0].mxu0
        %v1134 = vpop.f32.mrb[0].mxu0
        %v1135 = vadd.f32 %v1002, %v1134
        %v1136 = vpop.f32.mrb[0].mxu0
        %1137 = vmatprep.mubr.bf16.mxu0 0
        %1138 = vmatmul.mubr.bf16.gmra.mrb[0].mxu0 %v1047
        %v1139 = vpop.f32.mrb[0].mxu0
        %v1140 = vadd.f32 %v1007, %v1139
        %v1141 = vpop.f32.mrb[0].mxu0
        %v1142 = vpop.f32.mrb[0].mxu0
        %v1143 = vadd.f32 %v1010, %v1142
        %v1144 = vpop.f32.mrb[0].mxu0
        %1145 = vdwg.mxu0
        %v1146 = vrot.slane %v532, 1
        %v1147 = vrot.slane %v533, 1
        %v1148 = vrot.slane %v534, 1
        %v1149 = vrot.slane %v535, 1
        %v1150 = vrot.slane %v536, 1
        %v1151 = vrot.slane %v537, 1
        %v1152 = vrot.slane %v538, 1
        %v1153 = vrot.slane %v539, 1
        %v1154 = vrot.slane %v540, 1
        %v1155 = vrot.slane %v541, 1
        %v1156 = vrot.slane %v542, 1
        %v1157 = vrot.slane %v543, 1
        %v1158 = vrot.slane %v544, 1
        %v1159 = vrot.slane %v545, 1
        %v1160 = vrot.slane %v546, 1
        %v1161 = vrot.slane %v547, 1
        %vm1162 = vcmp.lt.s32.totalorder %v549, 7
        %v1163 = vsel %vm1162, %v1160, %v1161
        %v1164 = vsel %vm1162, %v1159, %v1160
        %v1165 = vsel %vm1162, %v1158, %v1159
        %v1166 = vsel %vm1162, %v1157, %v1158
        %v1167 = vsel %vm1162, %v1156, %v1157
        %v1168 = vsel %vm1162, %v1155, %v1156
        %v1169 = vsel %vm1162, %v1154, %v1155
        %v1170 = vsel %vm1162, %v1153, %v1154
        %v1171 = vsel %vm1162, %v1152, %v1153
        %v1172 = vsel %vm1162, %v1151, %v1152
        %v1173 = vsel %vm1162, %v1150, %v1151
        %v1174 = vsel %vm1162, %v1149, %v1150
        %v1175 = vsel %vm1162, %v1148, %v1149
        %v1176 = vsel %vm1162, %v1147, %v1148
        %v1177 = vsel %vm1162, %v1146, %v1147
        %v1178 = vsel %vm1162, %v1161, %v1146
        %vm1179 = vcmp.lt.s32.totalorder %v741, 7
        %vm1180 = vcmp.lt.s32.totalorder %v742, 7
        %vm1181 = vcmp.lt.s32.totalorder %v743, 7
        %vm1182 = vcmp.lt.s32.totalorder %v744, 7
        %vm1183 = vcmp.lt.s32.totalorder %v745, 7
        %vm1184 = vcmp.lt.s32.totalorder %v746, 7
        %vm1185 = vcmp.lt.s32.totalorder %v747, 7
        %vm1186 = vcmp.lt.s32.totalorder %v748, 7
        %vm1187 = vcmp.lt.s32.totalorder %v749, 7
        %vm1188 = vcmp.lt.s32.totalorder %v750, 7
        %vm1189 = vcmp.lt.s32.totalorder %v751, 7
        %vm1190 = vcmp.lt.s32.totalorder %v752, 7
        %vm1191 = vcmp.lt.s32.totalorder %v753, 7
        %vm1192 = vcmp.lt.s32.totalorder %v754, 7
        %vm1193 = vcmp.lt.s32.totalorder %v755, 7
        %vm1194 = vcmp.lt.s32.totalorder %v756, 7
        %v1195 = vsel %vm1179, 1, 0
        %v1196 = vsel %vm1180, 1, 0
        %v1197 = vsel %vm1181, 1, 0
        %v1198 = vsel %vm1182, 1, 0
        %v1199 = vsel %vm1183, 1, 0
        %v1200 = vsel %vm1184, 1, 0
        %v1201 = vsel %vm1185, 1, 0
        %v1202 = vsel %vm1186, 1, 0
        %v1203 = vsel %vm1187, 1, 0
        %v1204 = vsel %vm1188, 1, 0
        %v1205 = vsel %vm1189, 1, 0
        %v1206 = vsel %vm1190, 1, 0
        %v1207 = vsel %vm1191, 1, 0
        %v1208 = vsel %vm1192, 1, 0
        %v1209 = vsel %vm1193, 1, 0
        %v1210 = vsel %vm1194, 1, 0
        %vm1211 = vcmp.eq.s32.totalorder %v1195, 1
        %vm1212 = vcmp.eq.s32.totalorder %v1196, 1
        %vm1213 = vcmp.eq.s32.totalorder %v1197, 1
        %vm1214 = vcmp.eq.s32.totalorder %v1198, 1
        %vm1215 = vcmp.eq.s32.totalorder %v1199, 1
        %vm1216 = vcmp.eq.s32.totalorder %v1200, 1
        %vm1217 = vcmp.eq.s32.totalorder %v1201, 1
        %vm1218 = vcmp.eq.s32.totalorder %v1202, 1
        %vm1219 = vcmp.eq.s32.totalorder %v1203, 1
        %vm1220 = vcmp.eq.s32.totalorder %v1204, 1
        %vm1221 = vcmp.eq.s32.totalorder %v1205, 1
        %vm1222 = vcmp.eq.s32.totalorder %v1206, 1
        %vm1223 = vcmp.eq.s32.totalorder %v1207, 1
        %vm1224 = vcmp.eq.s32.totalorder %v1208, 1
        %vm1225 = vcmp.eq.s32.totalorder %v1209, 1
        %vm1226 = vcmp.eq.s32.totalorder %v1210, 1
        %v1227 = vsel %vm1211, %v1177, 0.0
        %v1228 = vsel %vm1212, %v1176, 0.0
        %v1229 = vsel %vm1213, %v1175, 0.0
        %v1230 = vsel %vm1214, %v1174, 0.0
        %v1231 = vsel %vm1215, %v1173, 0.0
        %v1232 = vsel %vm1216, %v1172, 0.0
        %v1233 = vsel %vm1217, %v1171, 0.0
        %v1234 = vsel %vm1218, %v1170, 0.0
        %v1235 = vsel %vm1219, %v1169, 0.0
        %v1236 = vsel %vm1220, %v1168, 0.0
        %v1237 = vsel %vm1221, %v1167, 0.0
        %v1238 = vsel %vm1222, %v1166, 0.0
        %v1239 = vsel %vm1223, %v1165, 0.0
        %v1240 = vsel %vm1224, %v1164, 0.0
        %v1241 = vsel %vm1225, %v1163, 0.0
        %v1242 = vsel %vm1226, %v1178, 0.0
        %v1243 = vpack.c.bf16 %v1228, %v1227
        %v1244 = vpack.c.bf16 %v1230, %v1229
        %v1245 = vpack.c.bf16 %v1232, %v1231
        %v1246 = vpack.c.bf16 %v1234, %v1233
        %v1247 = vpack.c.bf16 %v1236, %v1235
        %v1248 = vpack.c.bf16 %v1238, %v1237
        %v1249 = vpack.c.bf16 %v1240, %v1239
        %v1250 = vpack.c.bf16 %v1242, %v1241
        %s1251 = scalar_lea.vmem %s3, 32
        %v1252 = vld [vmem:[%s1251] sm:$0xf]
        %v1253 = vld [vmem:[%s1251 + $0x4] sm:$0xf]
        %v1254 = vld [vmem:[%s1251 + $0x8] sm:$0xf]
        %v1255 = vld [vmem:[%s1251 + $0xc] sm:$0xf]
        %v1260 = vunpack.c.l.b16 %v1252
        %v1261 = vunpack.c.l.b16 %v1253
        %v1262 = vunpack.c.l.b16 %v1254
        %v1263 = vunpack.c.l.b16 %v1255
        %v1264 = vpack.c.b16 %v1261, %v1260
        %v1265 = vpack.c.b16 %v1263, %v1262
        %v1269 = vsel %vm891, %v1243, 0
        %v1272 = vsel %vm891, %v1244, 0
        %v1275 = vsel %vm891, %v1245, 0
        %v1278 = vsel %vm891, %v1246, 0
        %v1281 = vsel %vm891, %v1247, 0
        %v1284 = vsel %vm891, %v1248, 0
        %v1287 = vsel %vm891, %v1249, 0
        %v1290 = vsel %vm891, %v1250, 0
        %1292 = vmatprep.subr.bf16.mxu0 0
        %1293 = vmatpush1.bf16.msra.mxu0 %v1264
        %1294 = vmatprep.subr.bf16.mxu0 0
        %1295 = vmatpush1.bf16.msra.mxu0 %v1265
        %1296 = vmatprep.subr.bf16.mxu0 0
        %1297 = vmatpush1.bf16.msra.mxu0 0
        %1298 = vmatprep.subr.bf16.mxu0 0
        %1299 = vmatpush1.bf16.msra.mxu0 0
        %1300 = vmatprep.subr.bf16.mxu0 0
        %1301 = vmatpush1.bf16.msra.mxu0 0
        %1302 = vmatprep.subr.bf16.mxu0 0
        %1303 = vmatpush1.bf16.msra.mxu0 0
        %1304 = vmatprep.subr.bf16.mxu0 0
        %1305 = vmatpush1.bf16.msra.mxu0 0
        %1306 = vmatprep.subr.bf16.mxu0 0
        %1307 = vmatpush1.bf16.msra.mxu0 0
        %1308 = vmatprep.subr.bf16.mxu0 0
        %1309 = vmatpush1.bf16.msra.mxu0 0
        %1310 = vmatprep.subr.bf16.mxu0 0
        %1311 = vmatpush1.bf16.msra.mxu0 0
        %1312 = vmatprep.subr.bf16.mxu0 0
        %1313 = vmatpush1.bf16.msra.mxu0 0
        %1314 = vmatprep.subr.bf16.mxu0 0
        %1315 = vmatpush1.bf16.msra.mxu0 0
        %1316 = vmatprep.subr.bf16.mxu0 0
        %1317 = vmatpush1.bf16.msra.mxu0 0
        %1318 = vmatprep.subr.bf16.mxu0 0
        %1319 = vmatpush1.bf16.msra.mxu0 0
        %1320 = vmatprep.subr.bf16.mxu0 0
        %1321 = vmatpush1.bf16.msra.mxu0 0
        %1322 = vmatprep.subr.bf16.mxu0 0
        %1323 = vmatpush1.bf16.msra.mxu0 0
        %1324 = vmatprep.mubr.bf16.mxu0 0
        %1325 = vmatmul.mubr.bf16.gmra.mrb[0].mxu0 %v1269
        %v1326 = vpop.f32.mrb[0].mxu0
        %v1327 = vadd.f32 0.0, %v1326
        %v1328 = vpop.f32.mrb[0].mxu0
        %v1329 = vpop.f32.mrb[0].mxu0
        %v1330 = vadd.f32 0.0, %v1329
        %v1331 = vpop.f32.mrb[0].mxu0
        %1332 = vmatprep.mubr.bf16.mxu0 0
        %1333 = vmatmul.mubr.bf16.gmra.mrb[0].mxu0 %v1272
        %v1334 = vpop.f32.mrb[0].mxu0
        %v1335 = vadd.f32 0.0, %v1334
        %v1336 = vpop.f32.mrb[0].mxu0
        %v1337 = vpop.f32.mrb[0].mxu0
        %v1338 = vadd.f32 0.0, %v1337
        %v1339 = vpop.f32.mrb[0].mxu0
        %1340 = vmatprep.mubr.bf16.mxu0 0
        %1341 = vmatmul.mubr.bf16.gmra.mrb[0].mxu0 %v1275
        %v1342 = vpop.f32.mrb[0].mxu0
        %v1343 = vadd.f32 0.0, %v1342
        %v1344 = vpop.f32.mrb[0].mxu0
        %v1345 = vpop.f32.mrb[0].mxu0
        %v1346 = vadd.f32 0.0, %v1345
        %v1347 = vpop.f32.mrb[0].mxu0
        %1348 = vmatprep.mubr.bf16.mxu0 0
        %1349 = vmatmul.mubr.bf16.gmra.mrb[0].mxu0 %v1278
        %v1350 = vpop.f32.mrb[0].mxu0
        %v1351 = vadd.f32 0.0, %v1350
        %v1352 = vpop.f32.mrb[0].mxu0
        %v1353 = vpop.f32.mrb[0].mxu0
        %v1354 = vadd.f32 0.0, %v1353
        %v1355 = vpop.f32.mrb[0].mxu0
        %1356 = vmatprep.mubr.bf16.mxu0 0
        %1357 = vmatmul.mubr.bf16.gmra.mrb[0].mxu0 %v1281
        %v1358 = vpop.f32.mrb[0].mxu0
        %v1359 = vadd.f32 0.0, %v1358
        %v1360 = vpop.f32.mrb[0].mxu0
        %v1361 = vpop.f32.mrb[0].mxu0
        %v1362 = vadd.f32 0.0, %v1361
        %v1363 = vpop.f32.mrb[0].mxu0
        %1364 = vmatprep.mubr.bf16.mxu0 0
        %1365 = vmatmul.mubr.bf16.gmra.mrb[0].mxu0 %v1284
        %v1366 = vpop.f32.mrb[0].mxu0
        %v1367 = vadd.f32 0.0, %v1366
        %v1368 = vpop.f32.mrb[0].mxu0
        %v1369 = vpop.f32.mrb[0].mxu0
        %v1370 = vadd.f32 0.0, %v1369
        %v1371 = vpop.f32.mrb[0].mxu0
        %1372 = vmatprep.mubr.bf16.mxu0 0
        %1373 = vmatmul.mubr.bf16.gmra.mrb[0].mxu0 %v1287
        %v1374 = vpop.f32.mrb[0].mxu0
        %v1375 = vadd.f32 0.0, %v1374
        %v1376 = vpop.f32.mrb[0].mxu0
        %v1377 = vpop.f32.mrb[0].mxu0
        %v1378 = vadd.f32 0.0, %v1377
        %v1379 = vpop.f32.mrb[0].mxu0
        %1380 = vmatprep.mubr.bf16.mxu0 0
        %1381 = vmatmul.mubr.bf16.gmra.mrb[0].mxu0 %v1290
        %v1382 = vpop.f32.mrb[0].mxu0
        %v1383 = vadd.f32 0.0, %v1382
        %v1384 = vpop.f32.mrb[0].mxu0
        %v1385 = vpop.f32.mrb[0].mxu0
        %v1386 = vadd.f32 0.0, %v1385
        %v1387 = vpop.f32.mrb[0].mxu0
        %1388 = vdwg.mxu0
        %v1389 = vadd.f32 %v1084, %v1327
        %v1390 = vadd.f32 %v1087, %v1330
        %v1391 = vadd.f32 %v1092, %v1335
        %v1392 = vadd.f32 %v1095, %v1338
        %v1393 = vadd.f32 %v1100, %v1343
        %v1394 = vadd.f32 %v1103, %v1346
        %v1395 = vadd.f32 %v1108, %v1351
        %v1396 = vadd.f32 %v1111, %v1354
        %v1397 = vadd.f32 %v1116, %v1359
        %v1398 = vadd.f32 %v1119, %v1362
        %v1399 = vadd.f32 %v1124, %v1367
        %v1400 = vadd.f32 %v1127, %v1370
        %v1401 = vadd.f32 %v1132, %v1375
        %v1402 = vadd.f32 %v1135, %v1378
        %v1403 = vadd.f32 %v1140, %v1383
        %v1404 = vadd.f32 %v1143, %v1386
        %v1405 = vld [vmem:[%s4] sm:$0x1]
        %v1407 = vlaneseq
        %v1408 = vshrl.u32 %v1407, 7
        %v1409 = vsub.s32 0, %v1408
        %v1410 = vrot.slane %v1405, %v1409
        %v1412 = vadd.f32 %v1389, %v1410
        %v1413 = vadd.f32 %v1390, %v1410
        %v1414 = vadd.f32 %v1391, %v1410
        %v1415 = vadd.f32 %v1392, %v1410
        %v1416 = vadd.f32 %v1393, %v1410
        %v1417 = vadd.f32 %v1394, %v1410
        %v1418 = vadd.f32 %v1395, %v1410
        %v1419 = vadd.f32 %v1396, %v1410
        %v1420 = vadd.f32 %v1397, %v1410
        %v1421 = vadd.f32 %v1398, %v1410
        %v1422 = vadd.f32 %v1399, %v1410
        %v1423 = vadd.f32 %v1400, %v1410
        %v1424 = vadd.f32 %v1401, %v1410
        %v1425 = vadd.f32 %v1402, %v1410
        %v1426 = vadd.f32 %v1403, %v1410
        %v1427 = vadd.f32 %v1404, %v1410
        %v1428 = vmax.f32 %v1412, 0.0
        %v1429 = vmax.f32 %v1413, 0.0
        %v1430 = vmax.f32 %v1414, 0.0
        %v1431 = vmax.f32 %v1415, 0.0
        %v1432 = vmax.f32 %v1416, 0.0
        %v1433 = vmax.f32 %v1417, 0.0
        %v1434 = vmax.f32 %v1418, 0.0
        %v1435 = vmax.f32 %v1419, 0.0
        %v1436 = vmax.f32 %v1420, 0.0
        %v1437 = vmax.f32 %v1421, 0.0
        %v1438 = vmax.f32 %v1422, 0.0
        %v1439 = vmax.f32 %v1423, 0.0
        %v1440 = vmax.f32 %v1424, 0.0
        %v1441 = vmax.f32 %v1425, 0.0
        %v1442 = vmax.f32 %v1426, 0.0
        %v1443 = vmax.f32 %v1427, 0.0
        %v1444 = vpack.c.bf16 %v1429, %v1428
        %v1445 = vpack.c.bf16 %v1431, %v1430
        %v1446 = vpack.c.bf16 %v1433, %v1432
        %v1447 = vpack.c.bf16 %v1435, %v1434
        %v1448 = vpack.c.bf16 %v1437, %v1436
        %v1449 = vpack.c.bf16 %v1439, %v1438
        %v1450 = vpack.c.bf16 %v1441, %v1440
        %v1451 = vpack.c.bf16 %v1443, %v1442
        %v1452 = vld [vmem:[%s5] sm:$0xf]
        %v1453 = vld [vmem:[%s5 + $0x4] sm:$0xf]
        %v1454 = vld [vmem:[%s5 + $0x8] sm:$0xf]
        %v1455 = vld [vmem:[%s5 + $0xc] sm:$0xf]
        %v1456 = vld [vmem:[%s6] sm:$0x1]
        %v1458 = vlaneseq
        %v1459 = vshrl.u32 %v1458, 7
        %v1460 = vsub.s32 0, %v1459
        %v1461 = vrot.slane %v1456, %v1460
        %v1467 = vunpack.c.l.b16 %v1452
        %v1468 = vunpack.c.l.b16 %v1453
        %v1469 = vunpack.c.l.b16 %v1454
        %v1470 = vunpack.c.l.b16 %v1455
        %v1471 = vpack.c.b16 %v1468, %v1467
        %v1472 = vpack.c.b16 %v1470, %v1469
        %v1476 = vsel %vm891, %v1444, 0
        %v1479 = vsel %vm891, %v1445, 0
        %v1482 = vsel %vm891, %v1446, 0
        %v1485 = vsel %vm891, %v1447, 0
        %v1488 = vsel %vm891, %v1448, 0
        %v1491 = vsel %vm891, %v1449, 0
        %v1494 = vsel %vm891, %v1450, 0
        %v1497 = vsel %vm891, %v1451, 0
        %1499 = vmatprep.subr.bf16.mxu0 0
        %1500 = vmatpush1.bf16.msra.mxu0 %v1471
        %1501 = vmatprep.subr.bf16.mxu0 0
        %1502 = vmatpush1.bf16.msra.mxu0 %v1472
        %1503 = vmatprep.subr.bf16.mxu0 0
        %1504 = vmatpush1.bf16.msra.mxu0 0
        %1505 = vmatprep.subr.bf16.mxu0 0
        %1506 = vmatpush1.bf16.msra.mxu0 0
        %1507 = vmatprep.subr.bf16.mxu0 0
        %1508 = vmatpush1.bf16.msra.mxu0 0
        %1509 = vmatprep.subr.bf16.mxu0 0
        %1510 = vmatpush1.bf16.msra.mxu0 0
        %1511 = vmatprep.subr.bf16.mxu0 0
        %1512 = vmatpush1.bf16.msra.mxu0 0
        %1513 = vmatprep.subr.bf16.mxu0 0
        %1514 = vmatpush1.bf16.msra.mxu0 0
        %1515 = vmatprep.subr.bf16.mxu0 0
        %1516 = vmatpush1.bf16.msra.mxu0 0
        %1517 = vmatprep.subr.bf16.mxu0 0
        %1518 = vmatpush1.bf16.msra.mxu0 0
        %1519 = vmatprep.subr.bf16.mxu0 0
        %1520 = vmatpush1.bf16.msra.mxu0 0
        %1521 = vmatprep.subr.bf16.mxu0 0
        %1522 = vmatpush1.bf16.msra.mxu0 0
        %1523 = vmatprep.subr.bf16.mxu0 0
        %1524 = vmatpush1.bf16.msra.mxu0 0
        %1525 = vmatprep.subr.bf16.mxu0 0
        %1526 = vmatpush1.bf16.msra.mxu0 0
        %1527 = vmatprep.subr.bf16.mxu0 0
        %1528 = vmatpush1.bf16.msra.mxu0 0
        %1529 = vmatprep.subr.bf16.mxu0 0
        %1530 = vmatpush1.bf16.msra.mxu0 0
        %1531 = vmatprep.mubr.bf16.mxu0 0
        %1532 = vmatmul.mubr.bf16.gmra.mrb[0].mxu0 %v1476
        %v1533 = vpop.f32.mrb[0].mxu0
        %v1534 = vadd.f32 %v1461, %v1533
        %v1535 = vpop.f32.mrb[0].mxu0
        %v1536 = vpop.f32.mrb[0].mxu0
        %v1537 = vadd.f32 %v1461, %v1536
        %v1538 = vpop.f32.mrb[0].mxu0
        %1539 = vmatprep.mubr.bf16.mxu0 0
        %1540 = vmatmul.mubr.bf16.gmra.mrb[0].mxu0 %v1479
        %v1541 = vpop.f32.mrb[0].mxu0
        %v1542 = vadd.f32 %v1461, %v1541
        %v1543 = vpop.f32.mrb[0].mxu0
        %v1544 = vpop.f32.mrb[0].mxu0
        %v1545 = vadd.f32 %v1461, %v1544
        %v1546 = vpop.f32.mrb[0].mxu0
        %1547 = vmatprep.mubr.bf16.mxu0 0
        %1548 = vmatmul.mubr.bf16.gmra.mrb[0].mxu0 %v1482
        %v1549 = vpop.f32.mrb[0].mxu0
        %v1550 = vadd.f32 %v1461, %v1549
        %v1551 = vpop.f32.mrb[0].mxu0
        %v1552 = vpop.f32.mrb[0].mxu0
        %v1553 = vadd.f32 %v1461, %v1552
        %v1554 = vpop.f32.mrb[0].mxu0
        %1555 = vmatprep.mubr.bf16.mxu0 0
        %1556 = vmatmul.mubr.bf16.gmra.mrb[0].mxu0 %v1485
        %v1557 = vpop.f32.mrb[0].mxu0
        %v1558 = vadd.f32 %v1461, %v1557
        %v1559 = vpop.f32.mrb[0].mxu0
        %v1560 = vpop.f32.mrb[0].mxu0
        %v1561 = vadd.f32 %v1461, %v1560
        %v1562 = vpop.f32.mrb[0].mxu0
        %1563 = vmatprep.mubr.bf16.mxu0 0
        %1564 = vmatmul.mubr.bf16.gmra.mrb[0].mxu0 %v1488
        %v1565 = vpop.f32.mrb[0].mxu0
        %v1566 = vadd.f32 %v1461, %v1565
        %v1567 = vpop.f32.mrb[0].mxu0
        %v1568 = vpop.f32.mrb[0].mxu0
        %v1569 = vadd.f32 %v1461, %v1568
        %v1570 = vpop.f32.mrb[0].mxu0
        %1571 = vmatprep.mubr.bf16.mxu0 0
        %1572 = vmatmul.mubr.bf16.gmra.mrb[0].mxu0 %v1491
        %v1573 = vpop.f32.mrb[0].mxu0
        %v1574 = vadd.f32 %v1461, %v1573
        %v1575 = vpop.f32.mrb[0].mxu0
        %v1576 = vpop.f32.mrb[0].mxu0
        %v1577 = vadd.f32 %v1461, %v1576
        %v1578 = vpop.f32.mrb[0].mxu0
        %1579 = vmatprep.mubr.bf16.mxu0 0
        %1580 = vmatmul.mubr.bf16.gmra.mrb[0].mxu0 %v1494
        %v1581 = vpop.f32.mrb[0].mxu0
        %v1582 = vadd.f32 %v1461, %v1581
        %v1583 = vpop.f32.mrb[0].mxu0
        %v1584 = vpop.f32.mrb[0].mxu0
        %v1585 = vadd.f32 %v1461, %v1584
        %v1586 = vpop.f32.mrb[0].mxu0
        %1587 = vmatprep.mubr.bf16.mxu0 0
        %1588 = vmatmul.mubr.bf16.gmra.mrb[0].mxu0 %v1497
        %v1589 = vpop.f32.mrb[0].mxu0
        %v1590 = vadd.f32 %v1461, %v1589
        %v1591 = vpop.f32.mrb[0].mxu0
        %v1592 = vpop.f32.mrb[0].mxu0
        %v1593 = vadd.f32 %v1461, %v1592
        %v1594 = vpop.f32.mrb[0].mxu0
        %1595 = vdwg.mxu0
        %v1596 = vunpack.c.l.bf16 %v300
        %v1597 = vunpack.c.l.bf16 %v301
        %v1598 = vunpack.c.l.bf16 %v302
        %v1599 = vunpack.c.l.bf16 %v303
        %v1600 = vunpack.c.l.bf16 %v304
        %v1601 = vunpack.c.l.bf16 %v305
        %v1602 = vunpack.c.l.bf16 %v306
        %v1603 = vunpack.c.l.bf16 %v307
        %v1604 = vunpack.c.l.bf16 %v308
        %v1605 = vunpack.c.l.bf16 %v309
        %v1606 = vunpack.c.l.bf16 %v310
        %v1607 = vunpack.c.l.bf16 %v311
        %v1608 = vunpack.c.l.bf16 %v312
        %v1609 = vunpack.c.l.bf16 %v313
        %v1610 = vunpack.c.l.bf16 %v314
        %v1611 = vunpack.c.l.bf16 %v315
        %v1612 = vadd.f32 %v1534, %v1596
        %v1613 = vadd.f32 %v1537, %v1597
        %v1614 = vadd.f32 %v1542, %v1598
        %v1615 = vadd.f32 %v1545, %v1599
        %v1616 = vadd.f32 %v1550, %v1600
        %v1617 = vadd.f32 %v1553, %v1601
        %v1618 = vadd.f32 %v1558, %v1602
        %v1619 = vadd.f32 %v1561, %v1603
        %v1620 = vadd.f32 %v1566, %v1604
        %v1621 = vadd.f32 %v1569, %v1605
        %v1622 = vadd.f32 %v1574, %v1606
        %v1623 = vadd.f32 %v1577, %v1607
        %v1624 = vadd.f32 %v1582, %v1608
        %v1625 = vadd.f32 %v1585, %v1609
        %v1626 = vadd.f32 %v1590, %v1610
        %v1627 = vadd.f32 %v1593, %v1611
        %v1628 = vmax.f32 %v1612, 0.0
        %v1629 = vmax.f32 %v1613, 0.0
        %v1630 = vmax.f32 %v1614, 0.0
        %v1631 = vmax.f32 %v1615, 0.0
        %v1632 = vmax.f32 %v1616, 0.0
        %v1633 = vmax.f32 %v1617, 0.0
        %v1634 = vmax.f32 %v1618, 0.0
        %v1635 = vmax.f32 %v1619, 0.0
        %v1636 = vmax.f32 %v1620, 0.0
        %v1637 = vmax.f32 %v1621, 0.0
        %v1638 = vmax.f32 %v1622, 0.0
        %v1639 = vmax.f32 %v1623, 0.0
        %v1640 = vmax.f32 %v1624, 0.0
        %v1641 = vmax.f32 %v1625, 0.0
        %v1642 = vmax.f32 %v1626, 0.0
        %v1643 = vmax.f32 %v1627, 0.0
        %v1644 = vpack.c.bf16 %v1629, %v1628
        %v1645 = vpack.c.bf16 %v1631, %v1630
        %v1646 = vpack.c.bf16 %v1633, %v1632
        %v1647 = vpack.c.bf16 %v1635, %v1634
        %v1648 = vpack.c.bf16 %v1637, %v1636
        %v1649 = vpack.c.bf16 %v1639, %v1638
        %v1650 = vpack.c.bf16 %v1641, %v1640
        %v1651 = vpack.c.bf16 %v1643, %v1642
        %v1660 = vunpack.c.l.b16 %v1644
        %v1661 = vunpack.c.h.b16 %v1644
        %v1662 = vunpack.c.l.b16 %v1645
        %v1663 = vunpack.c.h.b16 %v1645
        %v1664 = vunpack.c.l.b16 %v1646
        %v1665 = vunpack.c.h.b16 %v1646
        %v1666 = vunpack.c.l.b16 %v1647
        %v1667 = vunpack.c.h.b16 %v1647
        %v1668 = vunpack.c.l.b16 %v1648
        %v1669 = vunpack.c.h.b16 %v1648
        %v1670 = vunpack.c.l.b16 %v1649
        %v1671 = vunpack.c.h.b16 %v1649
        %v1672 = vunpack.c.l.b16 %v1650
        %v1673 = vunpack.c.h.b16 %v1650
        %v1674 = vunpack.c.l.b16 %v1651
        %v1675 = vunpack.c.h.b16 %v1651
        %v1676 = vpack.c.b16 %v1660, %v1660
        %v1677 = vpack.c.b16 %v1661, %v1661
        %v1678 = vpack.c.b16 %v1662, %v1662
        %v1679 = vpack.c.b16 %v1663, %v1663
        %v1680 = vpack.c.b16 %v1664, %v1664
        %v1681 = vpack.c.b16 %v1665, %v1665
        %v1682 = vpack.c.b16 %v1666, %v1666
        %v1683 = vpack.c.b16 %v1667, %v1667
        %v1684 = vpack.c.b16 %v1668, %v1668
        %v1685 = vpack.c.b16 %v1669, %v1669
        %v1686 = vpack.c.b16 %v1670, %v1670
        %v1687 = vpack.c.b16 %v1671, %v1671
        %v1688 = vpack.c.b16 %v1672, %v1672
        %v1689 = vpack.c.b16 %v1673, %v1673
        %v1690 = vpack.c.b16 %v1674, %v1674
        %v1691 = vpack.c.b16 %v1675, %v1675
        %1708 = vst [vmem:[%s296] sm:$0xf] %v1676
        %1709 = vst [vmem:[%s296 + $0x4] sm:$0xf] %v1677
        %1710 = vst [vmem:[%s296 + $0x8] sm:$0xf] %v1678
        %1711 = vst [vmem:[%s296 + $0xc] sm:$0xf] %v1679
        %1712 = vst [vmem:[%s296 + $0x10] sm:$0xf] %v1680
        %1713 = vst [vmem:[%s296 + $0x14] sm:$0xf] %v1681
        %1714 = vst [vmem:[%s296 + $0x18] sm:$0xf] %v1682
        %1715 = vst [vmem:[%s296 + $0x1c] sm:$0xf] %v1683
        %1716 = vst [vmem:[%s296 + $0x20] sm:$0xf] %v1684
        %1717 = vst [vmem:[%s296 + $0x24] sm:$0xf] %v1685
        %1718 = vst [vmem:[%s296 + $0x28] sm:$0xf] %v1686
        %1719 = vst [vmem:[%s296 + $0x2c] sm:$0xf] %v1687
        %1720 = vst [vmem:[%s296 + $0x30] sm:$0xf] %v1688
        %1721 = vst [vmem:[%s296 + $0x34] sm:$0xf] %v1689
        %1722 = vst [vmem:[%s296 + $0x38] sm:$0xf] %v1690
        %1723 = vst [vmem:[%s296 + $0x3c] sm:$0xf] %v1691
        %s1724 = sand.u32 %s184, 1
        %s1725 = scalar_lea.sflag [#allocation4], %s1724
        %s1726 = sand.u32 %s184, 1
        %s1727 = smul.addr %s1726, 64
        %s1728 = scalar_lea.vmem [#allocation5], %s1727
        // Predicated region
        $region53: #{tpu_custom_call.1} parent=47 // pred_check
          %p1729 = pneg %p194
        $region54: #{tpu_custom_call.1} parent=47 // pred_check_branch
          %1731 = sbr.rel (%p1729) target = $region56
        $region55: #{tpu_custom_call.1} parent=47 // pred_region
          %s1732 = smul.u32 16, %s24
          %s1734 = ssub.s32 1024, 1024
          %1735 = vsyncadd %s1725, %s1734
          %s1736 = smul.addr %s1732, 64
          %s1737 = scalar_lea.hbm %s7, %s1736
          %s1738 = sshll.u32 %s1728, 4
          %s1739 = int_to_ptr.vmem [resolvable:$true] %s1738
          %1744 = dma.vmem_to_hbm [thread:$0]  %s1739, 1024, %s1737, %s1725, 64, 64, 4
        $region56: #{tpu_custom_call.1} parent=47 // pred_fallthru
          _
      $region48: #{tpu_custom_call.1} parent=5 // pred_fallthru
        _
      %p1745 = scmp.le.s32.totalorder 2, %s19
      // Predicated region
      $region57: #{tpu_custom_call.1} parent=5 // pred_check
        %p1746 = pneg %p1745
      $region58: #{tpu_custom_call.1} parent=5 // pred_check_branch
        %1748 = sbr.rel (%p1746) target = $region60
      $region59: #{tpu_custom_call.1} parent=5 // pred_region
        %s1749 = ssub.s32 %s19, 2
        // Predicated region
        $region61: #{tpu_custom_call.1} parent=59 // pred_check
          %p1750 = pneg %p200
        $region62: #{tpu_custom_call.1} parent=59 // pred_check_branch
          %1752 = sbr.rel (%p1750) target = $region64
        $region63: #{tpu_custom_call.1} parent=59 // pred_region
          %s1753 = sand.u32 %s185, 1
          %s1754 = scalar_lea.sflag [#allocation4], %s1753
          %s1755 = sand.u32 %s185, 1
          %s1756 = smul.addr %s1755, 64
          %s1757 = scalar_lea.vmem [#allocation5], %s1756
          %1758 = dma.done %s1754, 1024
        $region64: #{tpu_custom_call.1} parent=59 // pred_fallthru
          _
      $region60: #{tpu_custom_call.1} parent=5 // pred_fallthru
        _
    $region6: #{tpu_custom_call.1} parent=1 // loop_footer
      %s23 = sadd.s32 1, %s19
    $region7: #{tpu_custom_call.1} parent=1 // loop_footer_branch
      %18 = sbr.rel target = $region3
    $region8: #{tpu_custom_call.1} parent=1 // loop_exit
      _
    %1759 = vsyncpa [#allocation3], 1
    %s1760 = scalar_lea.sflag [#allocation3], 1
    %1761 = vsyncpa %s1760, 1
    %1762 = vsyncpa [#allocation4], 1
    %s1763 = scalar_lea.sflag [#allocation4], 1
    %1764 = vsyncpa %s1763, 1

</llo_original>
